<compile_context>
chip_gen: v6e
topology: v6e:2x2x1
jax: 0.10.0
libtpu: 0.0.40
codegen_flags: <defaults>
</compile_context>

<pallas_src>
import functools

import jax
import jax.numpy as jnp
from jax.experimental import pallas as pl
from jax.experimental.pallas import tpu as pltpu

LANE = 128


def _round_up(x, m):
    return ((x + m - 1) // m) * m


def _vae_kernel(n_valid, bf16_tanh,
                x_ref, eps_ref,
                we1, be1, we2, be2,
                wmv, bmv,
                wd1, bd1, wd2, bd2, wd3, bd3,
                wp1, bp1, wp2, bp2, wp3, bp3,
                sc_ref,
                comp_ref, loss_ref):
    f32 = jnp.float32
    bf16 = jnp.bfloat16

    tm = x_ref.shape[0]
    lat = eps_ref.shape[-1]

    def dot(a, w_ref):
        # bf16 operands on the MXU, f32 accumulation.
        return jnp.dot(a.astype(bf16), w_ref[...], preferred_element_type=f32)

    def scaled_tanh(v, i):
        # ScaledTanh: tanh(x / scale) * scale, reciprocal precomputed as a scalar.
        scale = sc_ref[i]
        inv = sc_ref[6 + i]
        u = v * inv
        if bf16_tanh:
            # bf16 transcendental path (v6e/v7x EUP); output stays bf16 for the
            # next matmul so no extra cast pass is needed.
            return jnp.tanh(u.astype(bf16)) * scale.astype(bf16)
        return jnp.tanh(u) * scale

    # ---- encoder: Linear -> ScaledTanh -> Linear -> ScaledTanh ----
    x_in = x_ref[...]                                   # bf16 [tm, in_dim]
    h = scaled_tanh(dot(x_in, we1) + be1[...], 0)
    h = scaled_tanh(dot(h, we2) + be2[...], 1)

    # ---- fused mu / log_var head (single matmul, native 2*latent width) ----
    head = dot(h, wmv) + bmv[...]                       # f32 [tm, 2*lat]
    mu = head[:, :lat]
    log_var = head[:, lat:]

    # ---- reparameterize: z = mu + eps * std (exp computed once) ----
    std = jnp.exp(0.5 * log_var)
    z = mu + eps_ref[...].astype(f32) * std

    # ---- decoder: Linear -> ScaledTanh -> Linear -> ScaledTanh -> Linear ----
    d = scaled_tanh(dot(z, wd1) + bd1[...], 2)
    d = scaled_tanh(dot(d, wd2) + bd2[...], 3)
    compressed = dot(d, wd3) + bd3[...]
    comp_ref[...] = compressed.astype(comp_ref.dtype)

    # ---- row-validity mask (tokens >= n_valid are padding of the last tile) ----
    row = jax.lax.broadcasted_iota(jnp.int32, (tm, 1), 0) + pl.program_id(0) * tm
    rmask = (row < n_valid).astype(f32)

    # ---- KL partial sum (exp(log_var) = std*std, computed once) ----
    kl_row = -0.5 * jnp.sum(1.0 + log_var - mu * mu - std * std,
                            axis=-1, keepdims=True)
    kl_part = jnp.sum(kl_row * rmask)

    # ---- projection head + L1 consistency partial sum ----
    p = scaled_tanh(dot(compressed, wp1) + bp1[...], 4)
    p = scaled_tanh(dot(p, wp2) + bp2[...], 5)
    projected = dot(p, wp3) + bp3[...]
    x_f32 = x_ref[...].astype(f32)          # re-read: short live range for x
    cons_part = jnp.sum(jnp.abs(projected - x_f32) * rmask)

    # ---- single lane-dense loss output: sublanes 0..3 = KL, 4..7 = cons ----
    sub = jax.lax.broadcasted_iota(jnp.int32, (1, 8, LANE), 1)
    loss_ref[...] = jnp.where(sub < 4, kl_part, cons_part).astype(f32)


def prepare_params(params, scales):
    """One-time pad/cast of weights (avoid re-running ~20 tiny XLA ops per forward)."""
    in_dim, bot = params["we1"].shape
    lat = params["wmu"].shape[1]
    out_dim = params["wd3"].shape[1]
    bot_pad = _round_up(bot, LANE)

    def padw(w, r, c):
        return jnp.pad(w, ((0, r - w.shape[0]), (0, c - w.shape[1])))

    wdt = jnp.bfloat16   # MXU operands; biases stay f32 (added post-accumulation)
    prepped = dict(
        we1=padw(params["we1"], in_dim, bot_pad).astype(wdt),
        be1=padw(params["be1"], 1, bot_pad).astype(jnp.float32),
        we2=padw(params["we2"], bot_pad, bot_pad).astype(wdt),
        be2=padw(params["be2"], 1, bot_pad).astype(jnp.float32),
        wmv=jnp.concatenate([padw(params["wmu"], bot_pad, lat),
                             padw(params["wvar"], bot_pad, lat)], axis=1).astype(wdt),
        bmv=jnp.concatenate([params["bmu"], params["bvar"]], axis=1).astype(jnp.float32),
        wd1=padw(params["wd1"], lat, bot_pad).astype(wdt),
        bd1=padw(params["bd1"], 1, bot_pad).astype(jnp.float32),
        wd2=padw(params["wd2"], bot_pad, bot_pad).astype(wdt),
        bd2=padw(params["bd2"], 1, bot_pad).astype(jnp.float32),
        wd3=padw(params["wd3"], bot_pad, out_dim).astype(wdt),
        bd3=params["bd3"].astype(jnp.float32),
        wp1=padw(params["wp1"], out_dim, bot_pad).astype(wdt),
        bp1=padw(params["bp1"], 1, bot_pad).astype(jnp.float32),
        wp2=padw(params["wp2"], bot_pad, bot_pad).astype(wdt),
        bp2=padw(params["bp2"], 1, bot_pad).astype(jnp.float32),
        wp3=padw(params["wp3"], bot_pad, in_dim).astype(wdt),
        bp3=params["bp3"].astype(jnp.float32),
    )
    scales = scales.astype(jnp.float32)
    prepped["sc"] = jnp.concatenate([scales, 1.0 / scales])   # (12,) -> SMEM
    return prepped


_WEIGHT_NAMES = ["we1", "be1", "we2", "be2", "wmv", "bmv",
                 "wd1", "bd1", "wd2", "bd2", "wd3", "bd3",
                 "wp1", "bp1", "wp2", "bp2", "wp3", "bp3"]


def praxis_vae_forward(x, eps, prepped, *, beta=1.0, tm=1024, bf16_tanh=True):
    """x: [B, S, input_dim], eps: [B, S, latent_dim], prepped from prepare_params().
    Returns (compressed [B, S, output_dim], total_loss scalar)."""
    B, S, in_dim = x.shape
    lat = eps.shape[-1]
    out_dim = prepped["wd3"].shape[1]
    N = B * S

    # Tile: multiple of 8 rows; cap so the grid keeps >= 2 steps (v7x megacore).
    tm_cap = _round_up(max(1, (N + 1) // 2), 8)
    tm = max(8, min(tm, tm_cap))
    n_pad = _round_up(N, tm)
    grid = n_pad // tm

    # Token streams: native feature width (no 128-lane padding), x in bf16.
    x_flat = jnp.pad(x.reshape(N, in_dim).astype(jnp.bfloat16),
                     ((0, n_pad - N), (0, 0)))
    eps_flat = jnp.pad(eps.reshape(N, lat).astype(jnp.float32),
                       ((0, n_pad - N), (0, 0)))

    weights = [prepped[n] for n in _WEIGHT_NAMES]

    def const_spec(a):
        # Resident across the whole grid (constant index map -> no re-DMA).
        return pl.BlockSpec(a.shape, lambda i: (0,) * a.ndim)

    in_specs = (
        [pl.BlockSpec((tm, in_dim), lambda i: (i, 0)),
         pl.BlockSpec((tm, lat), lambda i: (i, 0))]
        + [const_spec(w) for w in weights]
        + [pl.BlockSpec(memory_space=pltpu.MemorySpace.SMEM)]
    )
    out_specs = (
        pl.BlockSpec((tm, out_dim), lambda i: (i, 0)),
        pl.BlockSpec((1, 8, LANE), lambda i: (i, 0, 0)),
    )

    comp_flat, loss_parts = pl.pallas_call(
        functools.partial(_vae_kernel, N, bf16_tanh),
        grid=(grid,),
        out_shape=(jax.ShapeDtypeStruct((n_pad, out_dim), jnp.float32),
                   jax.ShapeDtypeStruct((grid, 8, LANE), jnp.float32)),
        in_specs=in_specs,
        out_specs=out_specs,
        compiler_params=pltpu.CompilerParams(
            dimension_semantics=("parallel",),
            vmem_limit_bytes=48 * 1024 * 1024),
    )(x_flat, eps_flat, *weights, prepped["sc"])

    # Reduce per-tile partial sums with GLOBAL normalizers (tiling-invariant).
    kl_loss = jnp.sum(loss_parts[:, 0, 0]) / N
    consistency_loss = jnp.sum(loss_parts[:, 4, 0]) / (N * in_dim)
    total_loss = beta * kl_loss + consistency_loss

    compressed = comp_flat[:N].reshape(B, S, out_dim)
    return compressed, total_loss


def init_params(key, input_dim, output_dim):
    bottleneck = min(input_dim, output_dim) // 2
    latent = bottleneck // 2
    shapes = {
        # encoder
        "we1": (input_dim, bottleneck), "be1": (1, bottleneck),
        "we2": (bottleneck, bottleneck), "be2": (1, bottleneck),
        # heads
        "wmu": (bottleneck, latent), "bmu": (1, latent),
        "wvar": (bottleneck, latent), "bvar": (1, latent),
        # decoder
        "wd1": (latent, bottleneck), "bd1": (1, bottleneck),
        "wd2": (bottleneck, bottleneck), "bd2": (1, bottleneck),
        "wd3": (bottleneck, output_dim), "bd3": (1, output_dim),
        # projection (requires_projection=True path)
        "wp1": (output_dim, bottleneck), "bp1": (1, bottleneck),
        "wp2": (bottleneck, bottleneck), "bp2": (1, bottleneck),
        "wp3": (bottleneck, input_dim), "bp3": (1, input_dim),
    }
    params = {}
    keys = jax.random.split(key, len(shapes))
    for k, (name, shp) in zip(keys, sorted(shapes.items())):
        params[name] = (0.1 * jax.random.normal(k, shp)).astype(jnp.float32)
    # 6 ScaledTanh scales (2 encoder, 2 decoder, 2 projection); PyTorch inits to 1.0
    scales = jnp.ones((6,), dtype=jnp.float32)
    return params, scales, latent


def reference_forward(x, eps, params, scales, beta=1.0):
    """Plain-JAX f32 reference mirroring the PyTorch forward."""
    B, S, in_dim = x.shape
    xf = x.reshape(-1, in_dim)
    ef = eps.reshape(-1, eps.shape[-1])
    st = lambda v, s: jnp.tanh(v / s) * s
    h = st(xf @ params["we1"] + params["be1"], scales[0])
    h = st(h @ params["we2"] + params["be2"], scales[1])
    mu = h @ params["wmu"] + params["bmu"]
    lv = h @ params["wvar"] + params["bvar"]
    z = mu + ef * jnp.exp(0.5 * lv)
    d = st(z @ params["wd1"] + params["bd1"], scales[2])
    d = st(d @ params["wd2"] + params["bd2"], scales[3])
    comp = d @ params["wd3"] + params["bd3"]
    kl = jnp.mean(-0.5 * jnp.sum(1.0 + lv - mu ** 2 - jnp.exp(lv), axis=-1))
    p = st(comp @ params["wp1"] + params["bp1"], scales[4])
    p = st(p @ params["wp2"] + params["bp2"], scales[5])
    proj = p @ params["wp3"] + params["bp3"]
    cons = jnp.mean(jnp.abs(proj - xf))
    return comp.reshape(B, S, -1), beta * kl + cons


# TODO(synk): the debug reconstruction-quality branch (random 0.1% print of
# mse/mae/corr/cosine) has no kernel equivalent and is omitted.
# Note: eps (torch.randn_like) stays an explicit host-side input for
# determinism/testability; an in-kernel pltpu.prng_* variant would also remove
# that HBM stream if exact parity is not needed.

if __name__ == "__main__":
    key = jax.random.PRNGKey(0)

    fwd = jax.jit(praxis_vae_forward,
                  static_argnames=("beta", "tm", "bf16_tanh"))

    def run_case(B, S, input_dim, output_dim, beta, case_key):
        kp, kx, ke = jax.random.split(case_key, 3)
        params, scales, latent = init_params(kp, input_dim, output_dim)
        prepped = prepare_params(params, scales)   # pad/cast weights ONCE
        x = jax.random.normal(kx, (B, S, input_dim), dtype=jnp.float32)
        eps = jax.random.normal(ke, (B, S, latent), dtype=jnp.float32)

        compressed, total_loss = fwd(x, eps, prepped, beta=beta,
                                     tm=1024, bf16_tanh=True)
        compressed = jax.block_until_ready(compressed)
        total_loss = jax.block_until_ready(total_loss)

        ref_comp, ref_loss = reference_forward(x, eps, params, scales, beta)
        assert compressed.shape == (B, S, output_dim)
        # bf16 MXU operands + bf16 input stream + bf16 tanh -> looser tolerance
        # than the pure-f32 reference.
        assert jnp.allclose(compressed, ref_comp, atol=3e-2, rtol=3e-2), \
            float(jnp.max(jnp.abs(compressed - ref_comp)))
        assert jnp.allclose(total_loss, ref_loss, atol=3e-2, rtol=3e-2), \
            (float(total_loss), float(ref_loss))

    k1, k2 = jax.random.split(key)
    # Small case consistent with the module: [batch=2, seq=8, features=32].
    run_case(2, 8, 32, 32, 1.0, k1)
    # Multi-tile case exercising the grid + ragged row masking and megacore split.
    run_case(4, 200, 32, 32, 0.5, k2)

    print("KERNEL_OK")
</pallas_src>

<mosaic_0001>
module attributes {stable_mosaic.version = 11 : i64} {
  func.func @_vae_kernel(%arg0: i32, %arg1: memref<8x32xbf16, #tpu.memory_space<vmem>>, %arg2: memref<8x8xf32, #tpu.memory_space<vmem>>, %arg3: memref<32x128xbf16, #tpu.memory_space<vmem>>, %arg4: memref<1x128xf32, #tpu.memory_space<vmem>>, %arg5: memref<128x128xbf16, #tpu.memory_space<vmem>>, %arg6: memref<1x128xf32, #tpu.memory_space<vmem>>, %arg7: memref<128x16xbf16, #tpu.memory_space<vmem>>, %arg8: memref<1x16xf32, #tpu.memory_space<vmem>>, %arg9: memref<8x128xbf16, #tpu.memory_space<vmem>>, %arg10: memref<1x128xf32, #tpu.memory_space<vmem>>, %arg11: memref<128x128xbf16, #tpu.memory_space<vmem>>, %arg12: memref<1x128xf32, #tpu.memory_space<vmem>>, %arg13: memref<128x32xbf16, #tpu.memory_space<vmem>>, %arg14: memref<1x32xf32, #tpu.memory_space<vmem>>, %arg15: memref<32x128xbf16, #tpu.memory_space<vmem>>, %arg16: memref<1x128xf32, #tpu.memory_space<vmem>>, %arg17: memref<128x128xbf16, #tpu.memory_space<vmem>>, %arg18: memref<1x128xf32, #tpu.memory_space<vmem>>, %arg19: memref<128x32xbf16, #tpu.memory_space<vmem>>, %arg20: memref<1x32xf32, #tpu.memory_space<vmem>>, %arg21: memref<12xf32, #tpu.memory_space<smem>>, %arg22: memref<8x32xf32, #tpu.memory_space<vmem>>, %arg23: memref<1x8x128xf32, #tpu.memory_space<vmem>>) attributes {dimension_semantics = [#tpu.dimension_semantics<parallel>], iteration_bounds = array<i64: 2>, scalar_prefetch = 0 : i64, scratch_operands = 0 : i64, tpu.core_type = #tpu.core_type<tc>, window_params = [{transform_indices = @transform_0, window_bounds = array<i64: 8, 32>}, {transform_indices = @transform_1, window_bounds = array<i64: 8, 8>}, {pipeline_mode = #tpu.pipeline_mode<synchronous>, transform_indices = @transform_2, window_bounds = array<i64: 32, 128>}, {pipeline_mode = #tpu.pipeline_mode<synchronous>, transform_indices = @transform_3, window_bounds = array<i64: 1, 128>}, {pipeline_mode = #tpu.pipeline_mode<synchronous>, transform_indices = @transform_4, window_bounds = array<i64: 128, 128>}, {pipeline_mode = #tpu.pipeline_mode<synchronous>, transform_indices = @transform_5, window_bounds = array<i64: 1, 128>}, {pipeline_mode = #tpu.pipeline_mode<synchronous>, transform_indices = @transform_6, window_bounds = array<i64: 128, 16>}, {pipeline_mode = #tpu.pipeline_mode<synchronous>, transform_indices = @transform_7, window_bounds = array<i64: 1, 16>}, {pipeline_mode = #tpu.pipeline_mode<synchronous>, transform_indices = @transform_8, window_bounds = array<i64: 8, 128>}, {pipeline_mode = #tpu.pipeline_mode<synchronous>, transform_indices = @transform_9, window_bounds = array<i64: 1, 128>}, {pipeline_mode = #tpu.pipeline_mode<synchronous>, transform_indices = @transform_10, window_bounds = array<i64: 128, 128>}, {pipeline_mode = #tpu.pipeline_mode<synchronous>, transform_indices = @transform_11, window_bounds = array<i64: 1, 128>}, {pipeline_mode = #tpu.pipeline_mode<synchronous>, transform_indices = @transform_12, window_bounds = array<i64: 128, 32>}, {pipeline_mode = #tpu.pipeline_mode<synchronous>, transform_indices = @transform_13, window_bounds = array<i64: 1, 32>}, {pipeline_mode = #tpu.pipeline_mode<synchronous>, transform_indices = @transform_14, window_bounds = array<i64: 32, 128>}, {pipeline_mode = #tpu.pipeline_mode<synchronous>, transform_indices = @transform_15, window_bounds = array<i64: 1, 128>}, {pipeline_mode = #tpu.pipeline_mode<synchronous>, transform_indices = @transform_16, window_bounds = array<i64: 128, 128>}, {pipeline_mode = #tpu.pipeline_mode<synchronous>, transform_indices = @transform_17, window_bounds = array<i64: 1, 128>}, {pipeline_mode = #tpu.pipeline_mode<synchronous>, transform_indices = @transform_18, window_bounds = array<i64: 128, 32>}, {pipeline_mode = #tpu.pipeline_mode<synchronous>, transform_indices = @transform_19, window_bounds = array<i64: 1, 32>}, {transform_indices = @transform_20, window_bounds = array<i64: 12>}, {transform_indices = @transform_21, window_bounds = array<i64: 8, 32>}, {transform_indices = @transform_22, window_bounds = array<i64: 1, 8, 128>}]} {
    %c0 = arith.constant 0 : index
    %c0_0 = arith.constant 0 : index
    %0 = vector.load %arg1[%c0, %c0_0] : memref<8x32xbf16, #tpu.memory_space<vmem>>, vector<8x32xbf16>
    %c0_1 = arith.constant 0 : index
    %c0_2 = arith.constant 0 : index
    %1 = vector.load %arg3[%c0_1, %c0_2] : memref<32x128xbf16, #tpu.memory_space<vmem>>, vector<32x128xbf16>
    %cst = arith.constant dense<0.000000e+00> : vector<8x128xf32>
    %2 = tpu.matmul %0, %1, %cst {dimension_numbers = #tpu.dot_dimension_numbers<[1], [0], [0], [1], [0, 0, 1, 1], [], []>} : vector<8x32xbf16>, vector<32x128xbf16>, vector<8x128xf32> -> vector<8x128xf32>
    %c0_3 = arith.constant 0 : index
    %c0_4 = arith.constant 0 : index
    %3 = vector.load %arg4[%c0_3, %c0_4] : memref<1x128xf32, #tpu.memory_space<vmem>>, vector<1x128xf32>
    %4 = vector.broadcast %3 : vector<1x128xf32> to vector<8x128xf32>
    %5 = arith.addf %2, %4 : vector<8x128xf32>
    %c0_5 = arith.constant 0 : index
    %6 = memref.load %arg21[%c0_5] : memref<12xf32, #tpu.memory_space<smem>>
    %c6 = arith.constant 6 : index
    %7 = memref.load %arg21[%c6] : memref<12xf32, #tpu.memory_space<smem>>
    %8 = vector.broadcast %7 : f32 to vector<8x128xf32>
    %9 = arith.mulf %5, %8 : vector<8x128xf32>
    %10 = arith.truncf %9 : vector<8x128xf32> to vector<8x128xbf16>
    %11 = math.tanh %10 : vector<8x128xbf16>
    %12 = arith.truncf %6 : f32 to bf16
    %13 = vector.broadcast %12 : bf16 to vector<8x128xbf16>
    %14 = arith.mulf %11, %13 : vector<8x128xbf16>
    %c0_6 = arith.constant 0 : index
    %c0_7 = arith.constant 0 : index
    %15 = vector.load %arg5[%c0_6, %c0_7] : memref<128x128xbf16, #tpu.memory_space<vmem>>, vector<128x128xbf16>
    %cst_8 = arith.constant dense<0.000000e+00> : vector<8x128xf32>
    %16 = tpu.matmul %14, %15, %cst_8 {dimension_numbers = #tpu.dot_dimension_numbers<[1], [0], [0], [1], [0, 0, 1, 1], [], []>} : vector<8x128xbf16>, vector<128x128xbf16>, vector<8x128xf32> -> vector<8x128xf32>
    %c0_9 = arith.constant 0 : index
    %c0_10 = arith.constant 0 : index
    %17 = vector.load %arg6[%c0_9, %c0_10] : memref<1x128xf32, #tpu.memory_space<vmem>>, vector<1x128xf32>
    %18 = vector.broadcast %17 : vector<1x128xf32> to vector<8x128xf32>
    %19 = arith.addf %16, %18 : vector<8x128xf32>
    %c1 = arith.constant 1 : index
    %20 = memref.load %arg21[%c1] : memref<12xf32, #tpu.memory_space<smem>>
    %c7 = arith.constant 7 : index
    %21 = memref.load %arg21[%c7] : memref<12xf32, #tpu.memory_space<smem>>
    %22 = vector.broadcast %21 : f32 to vector<8x128xf32>
    %23 = arith.mulf %19, %22 : vector<8x128xf32>
    %24 = arith.truncf %23 : vector<8x128xf32> to vector<8x128xbf16>
    %25 = math.tanh %24 : vector<8x128xbf16>
    %26 = arith.truncf %20 : f32 to bf16
    %27 = vector.broadcast %26 : bf16 to vector<8x128xbf16>
    %28 = arith.mulf %25, %27 : vector<8x128xbf16>
    %c0_11 = arith.constant 0 : index
    %c0_12 = arith.constant 0 : index
    %29 = vector.load %arg7[%c0_11, %c0_12] : memref<128x16xbf16, #tpu.memory_space<vmem>>, vector<128x16xbf16>
    %cst_13 = arith.constant dense<0.000000e+00> : vector<8x16xf32>
    %30 = tpu.matmul %28, %29, %cst_13 {dimension_numbers = #tpu.dot_dimension_numbers<[1], [0], [0], [1], [0, 0, 1, 1], [], []>} : vector<8x128xbf16>, vector<128x16xbf16>, vector<8x16xf32> -> vector<8x16xf32>
    %c0_14 = arith.constant 0 : index
    %c0_15 = arith.constant 0 : index
    %31 = vector.load %arg8[%c0_14, %c0_15] : memref<1x16xf32, #tpu.memory_space<vmem>>, vector<1x16xf32>
    %32 = vector.broadcast %31 : vector<1x16xf32> to vector<8x16xf32>
    %33 = arith.addf %30, %32 : vector<8x16xf32>
    %34 = vector.extract_strided_slice %33 {offsets = [0, 0], sizes = [8, 8], strides = [1, 1]} : vector<8x16xf32> to vector<8x8xf32>
    %35 = vector.extract_strided_slice %33 {offsets = [0, 8], sizes = [8, 8], strides = [1, 1]} : vector<8x16xf32> to vector<8x8xf32>
    %cst_16 = arith.constant 5.000000e-01 : f32
    %36 = vector.broadcast %cst_16 : f32 to vector<8x8xf32>
    %37 = arith.mulf %36, %35 : vector<8x8xf32>
    %38 = math.exp %37 : vector<8x8xf32>
    %c0_17 = arith.constant 0 : index
    %c0_18 = arith.constant 0 : index
    %39 = vector.load %arg2[%c0_17, %c0_18] : memref<8x8xf32, #tpu.memory_space<vmem>>, vector<8x8xf32>
    %40 = arith.mulf %39, %38 : vector<8x8xf32>
    %41 = arith.addf %34, %40 : vector<8x8xf32>
    %42 = arith.truncf %41 : vector<8x8xf32> to vector<8x8xbf16>
    %c0_19 = arith.constant 0 : index
    %c0_20 = arith.constant 0 : index
    %43 = vector.load %arg9[%c0_19, %c0_20] : memref<8x128xbf16, #tpu.memory_space<vmem>>, vector<8x128xbf16>
    %cst_21 = arith.constant dense<0.000000e+00> : vector<8x128xf32>
    %44 = tpu.matmul %42, %43, %cst_21 {dimension_numbers = #tpu.dot_dimension_numbers<[1], [0], [0], [1], [0, 0, 1, 1], [], []>} : vector<8x8xbf16>, vector<8x128xbf16>, vector<8x128xf32> -> vector<8x128xf32>
    %c0_22 = arith.constant 0 : index
    %c0_23 = arith.constant 0 : index
    %45 = vector.load %arg10[%c0_22, %c0_23] : memref<1x128xf32, #tpu.memory_space<vmem>>, vector<1x128xf32>
    %46 = vector.broadcast %45 : vector<1x128xf32> to vector<8x128xf32>
    %47 = arith.addf %44, %46 : vector<8x128xf32>
    %c2 = arith.constant 2 : index
    %48 = memref.load %arg21[%c2] : memref<12xf32, #tpu.memory_space<smem>>
    %c8 = arith.constant 8 : index
    %49 = memref.load %arg21[%c8] : memref<12xf32, #tpu.memory_space<smem>>
    %50 = vector.broadcast %49 : f32 to vector<8x128xf32>
    %51 = arith.mulf %47, %50 : vector<8x128xf32>
    %52 = arith.truncf %51 : vector<8x128xf32> to vector<8x128xbf16>
    %53 = math.tanh %52 : vector<8x128xbf16>
    %54 = arith.truncf %48 : f32 to bf16
    %55 = vector.broadcast %54 : bf16 to vector<8x128xbf16>
    %56 = arith.mulf %53, %55 : vector<8x128xbf16>
    %c0_24 = arith.constant 0 : index
    %c0_25 = arith.constant 0 : index
    %57 = vector.load %arg11[%c0_24, %c0_25] : memref<128x128xbf16, #tpu.memory_space<vmem>>, vector<128x128xbf16>
    %cst_26 = arith.constant dense<0.000000e+00> : vector<8x128xf32>
    %58 = tpu.matmul %56, %57, %cst_26 {dimension_numbers = #tpu.dot_dimension_numbers<[1], [0], [0], [1], [0, 0, 1, 1], [], []>} : vector<8x128xbf16>, vector<128x128xbf16>, vector<8x128xf32> -> vector<8x128xf32>
    %c0_27 = arith.constant 0 : index
    %c0_28 = arith.constant 0 : index
    %59 = vector.load %arg12[%c0_27, %c0_28] : memref<1x128xf32, #tpu.memory_space<vmem>>, vector<1x128xf32>
    %60 = vector.broadcast %59 : vector<1x128xf32> to vector<8x128xf32>
    %61 = arith.addf %58, %60 : vector<8x128xf32>
    %c3 = arith.constant 3 : index
    %62 = memref.load %arg21[%c3] : memref<12xf32, #tpu.memory_space<smem>>
    %c9 = arith.constant 9 : index
    %63 = memref.load %arg21[%c9] : memref<12xf32, #tpu.memory_space<smem>>
    %64 = vector.broadcast %63 : f32 to vector<8x128xf32>
    %65 = arith.mulf %61, %64 : vector<8x128xf32>
    %66 = arith.truncf %65 : vector<8x128xf32> to vector<8x128xbf16>
    %67 = math.tanh %66 : vector<8x128xbf16>
    %68 = arith.truncf %62 : f32 to bf16
    %69 = vector.broadcast %68 : bf16 to vector<8x128xbf16>
    %70 = arith.mulf %67, %69 : vector<8x128xbf16>
    %c0_29 = arith.constant 0 : index
    %c0_30 = arith.constant 0 : index
    %71 = vector.load %arg13[%c0_29, %c0_30] : memref<128x32xbf16, #tpu.memory_space<vmem>>, vector<128x32xbf16>
    %cst_31 = arith.constant dense<0.000000e+00> : vector<8x32xf32>
    %72 = tpu.matmul %70, %71, %cst_31 {dimension_numbers = #tpu.dot_dimension_numbers<[1], [0], [0], [1], [0, 0, 1, 1], [], []>} : vector<8x128xbf16>, vector<128x32xbf16>, vector<8x32xf32> -> vector<8x32xf32>
    %c0_32 = arith.constant 0 : index
    %c0_33 = arith.constant 0 : index
    %73 = vector.load %arg14[%c0_32, %c0_33] : memref<1x32xf32, #tpu.memory_space<vmem>>, vector<1x32xf32>
    %74 = vector.broadcast %73 : vector<1x32xf32> to vector<8x32xf32>
    %75 = arith.addf %72, %74 : vector<8x32xf32>
    %c0_34 = arith.constant 0 : index
    %c0_35 = arith.constant 0 : index
    %76 = vector.load %arg22[%c0_34, %c0_35] : memref<8x32xf32, #tpu.memory_space<vmem>>, vector<8x32xf32>
    tpu.vector_store %arg22[%c0_34, %c0_35], %75 {strides = array<i32>} : memref<8x32xf32, #tpu.memory_space<vmem>>, vector<8x32xf32>,
    %77 = tpu.iota {dimensions = array<i32: 0>} : vector<8x1xi32>
    %c8_i32 = arith.constant 8 : i32
    %78 = arith.muli %arg0, %c8_i32 : i32
    %79 = vector.broadcast %78 : i32 to vector<8x1xi32>
    %80 = arith.addi %77, %79 : vector<8x1xi32>
    %c16_i32 = arith.constant 16 : i32
    %81 = vector.broadcast %c16_i32 : i32 to vector<8x1xi32>
    %82 = arith.cmpi slt, %80, %81 : vector<8x1xi32>
    %83 = arith.extui %82 : vector<8x1xi1> to vector<8x1xi32>
    %84 = arith.sitofp %83 : vector<8x1xi32> to vector<8x1xf32>
    %cst_36 = arith.constant 1.000000e+00 : f32
    %85 = vector.broadcast %cst_36 : f32 to vector<8x8xf32>
    %86 = arith.addf %85, %35 : vector<8x8xf32>
    %87 = arith.mulf %34, %34 : vector<8x8xf32>
    %88 = arith.subf %86, %87 : vector<8x8xf32>
    %89 = arith.mulf %38, %38 : vector<8x8xf32>
    %90 = arith.subf %88, %89 : vector<8x8xf32>
    %cst_37 = arith.constant dense<0.000000e+00> : vector<8xf32>
    %91 = vector.multi_reduction <add>, %90, %cst_37 [1] : vector<8x8xf32> to vector<8xf32>
    %92 = vector.shape_cast %91 : vector<8xf32> to vector<8x1xf32>
    %cst_38 = arith.constant -5.000000e-01 : f32
    %93 = vector.broadcast %cst_38 : f32 to vector<8x1xf32>
    %94 = arith.mulf %93, %92 : vector<8x1xf32>
    %95 = arith.mulf %94, %84 : vector<8x1xf32>
    %96 = vector.shape_cast %95 : vector<8x1xf32> to vector<1x8x1xf32>
    %cst_39 = arith.constant dense<0.000000e+00> : vector<1xf32>
    %97 = vector.multi_reduction <add>, %96, %cst_39 [1, 2] : vector<1x8x1xf32> to vector<1xf32>
    %98 = vector.shape_cast %97 : vector<1xf32> to vector<1x1x1xf32>
    %99 = vector.extract %98[0, 0, 0] : f32 from vector<1x1x1xf32>
    %100 = arith.truncf %75 : vector<8x32xf32> to vector<8x32xbf16>
    %c0_40 = arith.constant 0 : index
    %c0_41 = arith.constant 0 : index
    %101 = vector.load %arg15[%c0_40, %c0_41] : memref<32x128xbf16, #tpu.memory_space<vmem>>, vector<32x128xbf16>
    %cst_42 = arith.constant dense<0.000000e+00> : vector<8x128xf32>
    %102 = tpu.matmul %100, %101, %cst_42 {dimension_numbers = #tpu.dot_dimension_numbers<[1], [0], [0], [1], [0, 0, 1, 1], [], []>} : vector<8x32xbf16>, vector<32x128xbf16>, vector<8x128xf32> -> vector<8x128xf32>
    %c0_43 = arith.constant 0 : index
    %c0_44 = arith.constant 0 : index
    %103 = vector.load %arg16[%c0_43, %c0_44] : memref<1x128xf32, #tpu.memory_space<vmem>>, vector<1x128xf32>
    %104 = vector.broadcast %103 : vector<1x128xf32> to vector<8x128xf32>
    %105 = arith.addf %102, %104 : vector<8x128xf32>
    %c4 = arith.constant 4 : index
    %106 = memref.load %arg21[%c4] : memref<12xf32, #tpu.memory_space<smem>>
    %c10 = arith.constant 10 : index
    %107 = memref.load %arg21[%c10] : memref<12xf32, #tpu.memory_space<smem>>
    %108 = vector.broadcast %107 : f32 to vector<8x128xf32>
    %109 = arith.mulf %105, %108 : vector<8x128xf32>
    %110 = arith.truncf %109 : vector<8x128xf32> to vector<8x128xbf16>
    %111 = math.tanh %110 : vector<8x128xbf16>
    %112 = arith.truncf %106 : f32 to bf16
    %113 = vector.broadcast %112 : bf16 to vector<8x128xbf16>
    %114 = arith.mulf %111, %113 : vector<8x128xbf16>
    %c0_45 = arith.constant 0 : index
    %c0_46 = arith.constant 0 : index
    %115 = vector.load %arg17[%c0_45, %c0_46] : memref<128x128xbf16, #tpu.memory_space<vmem>>, vector<128x128xbf16>
    %cst_47 = arith.constant dense<0.000000e+00> : vector<8x128xf32>
    %116 = tpu.matmul %114, %115, %cst_47 {dimension_numbers = #tpu.dot_dimension_numbers<[1], [0], [0], [1], [0, 0, 1, 1], [], []>} : vector<8x128xbf16>, vector<128x128xbf16>, vector<8x128xf32> -> vector<8x128xf32>
    %c0_48 = arith.constant 0 : index
    %c0_49 = arith.constant 0 : index
    %117 = vector.load %arg18[%c0_48, %c0_49] : memref<1x128xf32, #tpu.memory_space<vmem>>, vector<1x128xf32>
    %118 = vector.broadcast %117 : vector<1x128xf32> to vector<8x128xf32>
    %119 = arith.addf %116, %118 : vector<8x128xf32>
    %c5 = arith.constant 5 : index
    %120 = memref.load %arg21[%c5] : memref<12xf32, #tpu.memory_space<smem>>
    %c11 = arith.constant 11 : index
    %121 = memref.load %arg21[%c11] : memref<12xf32, #tpu.memory_space<smem>>
    %122 = vector.broadcast %121 : f32 to vector<8x128xf32>
    %123 = arith.mulf %119, %122 : vector<8x128xf32>
    %124 = arith.truncf %123 : vector<8x128xf32> to vector<8x128xbf16>
    %125 = math.tanh %124 : vector<8x128xbf16>
    %126 = arith.truncf %120 : f32 to bf16
    %127 = vector.broadcast %126 : bf16 to vector<8x128xbf16>
    %128 = arith.mulf %125, %127 : vector<8x128xbf16>
    %c0_50 = arith.constant 0 : index
    %c0_51 = arith.constant 0 : index
    %129 = vector.load %arg19[%c0_50, %c0_51] : memref<128x32xbf16, #tpu.memory_space<vmem>>, vector<128x32xbf16>
    %cst_52 = arith.constant dense<0.000000e+00> : vector<8x32xf32>
    %130 = tpu.matmul %128, %129, %cst_52 {dimension_numbers = #tpu.dot_dimension_numbers<[1], [0], [0], [1], [0, 0, 1, 1], [], []>} : vector<8x128xbf16>, vector<128x32xbf16>, vector<8x32xf32> -> vector<8x32xf32>
    %c0_53 = arith.constant 0 : index
    %c0_54 = arith.constant 0 : index
    %131 = vector.load %arg20[%c0_53, %c0_54] : memref<1x32xf32, #tpu.memory_space<vmem>>, vector<1x32xf32>
    %132 = vector.broadcast %131 : vector<1x32xf32> to vector<8x32xf32>
    %133 = arith.addf %130, %132 : vector<8x32xf32>
    %c0_55 = arith.constant 0 : index
    %c0_56 = arith.constant 0 : index
    %134 = vector.load %arg1[%c0_55, %c0_56] : memref<8x32xbf16, #tpu.memory_space<vmem>>, vector<8x32xbf16>
    %135 = arith.extf %134 : vector<8x32xbf16> to vector<8x32xf32>
    %136 = arith.subf %133, %135 : vector<8x32xf32>
    %137 = math.absf %136 : vector<8x32xf32>
    %138 = vector.broadcast %84 : vector<8x1xf32> to vector<8x32xf32>
    %139 = arith.mulf %137, %138 : vector<8x32xf32>
    %140 = vector.shape_cast %139 : vector<8x32xf32> to vector<1x8x32xf32>
    %cst_57 = arith.constant dense<0.000000e+00> : vector<1xf32>
    %141 = vector.multi_reduction <add>, %140, %cst_57 [1, 2] : vector<1x8x32xf32> to vector<1xf32>
    %142 = vector.shape_cast %141 : vector<1xf32> to vector<1x1x1xf32>
    %143 = vector.extract %142[0, 0, 0] : f32 from vector<1x1x1xf32>
    %144 = tpu.iota {dimensions = array<i32: 1>} : vector<1x8x128xi32>
    %c4_i32 = arith.constant 4 : i32
    %145 = vector.broadcast %c4_i32 : i32 to vector<1x8x128xi32>
    %146 = arith.cmpi slt, %144, %145 : vector<1x8x128xi32>
    %147 = vector.broadcast %99 : f32 to vector<1x8x128xf32>
    %148 = vector.broadcast %143 : f32 to vector<1x8x128xf32>
    %149 = arith.select %146, %147, %148 : vector<1x8x128xi1>, vector<1x8x128xf32>
    %c0_58 = arith.constant 0 : index
    %c0_59 = arith.constant 0 : index
    %c0_60 = arith.constant 0 : index
    %150 = vector.load %arg23[%c0_58, %c0_59, %c0_60] : memref<1x8x128xf32, #tpu.memory_space<vmem>>, vector<1x8x128xf32>
    tpu.vector_store %arg23[%c0_58, %c0_59, %c0_60], %149 {strides = array<i32>} : memref<1x8x128xf32, #tpu.memory_space<vmem>>, vector<1x8x128xf32>,
    return
  }
  func.func @transform_0(%arg0: i32) -> (i32, i32) {
    %c0_i32 = arith.constant 0 : i32
    %c0_i32_0 = arith.constant 0 : i32
    return %arg0, %c0_i32 : i32, i32
  }
  func.func @transform_1(%arg0: i32) -> (i32, i32) {
    %c0_i32 = arith.constant 0 : i32
    %c0_i32_0 = arith.constant 0 : i32
    return %arg0, %c0_i32 : i32, i32
  }
  func.func @transform_2(%arg0: i32) -> (i32, i32) {
    %c0_i32 = arith.constant 0 : i32
    %c0_i32_0 = arith.constant 0 : i32
    %c0_i32_1 = arith.constant 0 : i32
    return %c0_i32, %c0_i32_0 : i32, i32
  }
  func.func @transform_3(%arg0: i32) -> (i32, i32) {
    %c0_i32 = arith.constant 0 : i32
    %c0_i32_0 = arith.constant 0 : i32
    %c0_i32_1 = arith.constant 0 : i32
    return %c0_i32, %c0_i32_0 : i32, i32
  }
  func.func @transform_4(%arg0: i32) -> (i32, i32) {
    %c0_i32 = arith.constant 0 : i32
    %c0_i32_0 = arith.constant 0 : i32
    %c0_i32_1 = arith.constant 0 : i32
    return %c0_i32, %c0_i32_0 : i32, i32
  }
  func.func @transform_5(%arg0: i32) -> (i32, i32) {
    %c0_i32 = arith.constant 0 : i32
    %c0_i32_0 = arith.constant 0 : i32
    %c0_i32_1 = arith.constant 0 : i32
    return %c0_i32, %c0_i32_0 : i32, i32
  }
  func.func @transform_6(%arg0: i32) -> (i32, i32) {
    %c0_i32 = arith.constant 0 : i32
    %c0_i32_0 = arith.constant 0 : i32
    %c0_i32_1 = arith.constant 0 : i32
    return %c0_i32, %c0_i32_0 : i32, i32
  }
  func.func @transform_7(%arg0: i32) -> (i32, i32) {
    %c0_i32 = arith.constant 0 : i32
    %c0_i32_0 = arith.constant 0 : i32
    %c0_i32_1 = arith.constant 0 : i32
    return %c0_i32, %c0_i32_0 : i32, i32
  }
  func.func @transform_8(%arg0: i32) -> (i32, i32) {
    %c0_i32 = arith.constant 0 : i32
    %c0_i32_0 = arith.constant 0 : i32
    %c0_i32_1 = arith.constant 0 : i32
    return %c0_i32, %c0_i32_0 : i32, i32
  }
  func.func @transform_9(%arg0: i32) -> (i32, i32) {
    %c0_i32 = arith.constant 0 : i32
    %c0_i32_0 = arith.constant 0 : i32
    %c0_i32_1 = arith.constant 0 : i32
    return %c0_i32, %c0_i32_0 : i32, i32
  }
  func.func @transform_10(%arg0: i32) -> (i32, i32) {
    %c0_i32 = arith.constant 0 : i32
    %c0_i32_0 = arith.constant 0 : i32
    %c0_i32_1 = arith.constant 0 : i32
    return %c0_i32, %c0_i32_0 : i32, i32
  }
  func.func @transform_11(%arg0: i32) -> (i32, i32) {
    %c0_i32 = arith.constant 0 : i32
    %c0_i32_0 = arith.constant 0 : i32
    %c0_i32_1 = arith.constant 0 : i32
    return %c0_i32, %c0_i32_0 : i32, i32
  }
  func.func @transform_12(%arg0: i32) -> (i32, i32) {
    %c0_i32 = arith.constant 0 : i32
    %c0_i32_0 = arith.constant 0 : i32
    %c0_i32_1 = arith.constant 0 : i32
    return %c0_i32, %c0_i32_0 : i32, i32
  }
  func.func @transform_13(%arg0: i32) -> (i32, i32) {
    %c0_i32 = arith.constant 0 : i32
    %c0_i32_0 = arith.constant 0 : i32
    %c0_i32_1 = arith.constant 0 : i32
    return %c0_i32, %c0_i32_0 : i32, i32
  }
  func.func @transform_14(%arg0: i32) -> (i32, i32) {
    %c0_i32 = arith.constant 0 : i32
    %c0_i32_0 = arith.constant 0 : i32
    %c0_i32_1 = arith.constant 0 : i32
    return %c0_i32, %c0_i32_0 : i32, i32
  }
  func.func @transform_15(%arg0: i32) -> (i32, i32) {
    %c0_i32 = arith.constant 0 : i32
    %c0_i32_0 = arith.constant 0 : i32
    %c0_i32_1 = arith.constant 0 : i32
    return %c0_i32, %c0_i32_0 : i32, i32
  }
  func.func @transform_16(%arg0: i32) -> (i32, i32) {
    %c0_i32 = arith.constant 0 : i32
    %c0_i32_0 = arith.constant 0 : i32
    %c0_i32_1 = arith.constant 0 : i32
    return %c0_i32, %c0_i32_0 : i32, i32
  }
  func.func @transform_17(%arg0: i32) -> (i32, i32) {
    %c0_i32 = arith.constant 0 : i32
    %c0_i32_0 = arith.constant 0 : i32
    %c0_i32_1 = arith.constant 0 : i32
    return %c0_i32, %c0_i32_0 : i32, i32
  }
  func.func @transform_18(%arg0: i32) -> (i32, i32) {
    %c0_i32 = arith.constant 0 : i32
    %c0_i32_0 = arith.constant 0 : i32
    %c0_i32_1 = arith.constant 0 : i32
    return %c0_i32, %c0_i32_0 : i32, i32
  }
  func.func @transform_19(%arg0: i32) -> (i32, i32) {
    %c0_i32 = arith.constant 0 : i32
    %c0_i32_0 = arith.constant 0 : i32
    %c0_i32_1 = arith.constant 0 : i32
    return %c0_i32, %c0_i32_0 : i32, i32
  }
  func.func @transform_20(%arg0: i32) -> i32 {
    %c0_i32 = arith.constant 0 : i32
    %c0_i32_0 = arith.constant 0 : i32
    return %c0_i32 : i32
  }
  func.func @transform_21(%arg0: i32) -> (i32, i32) {
    %c0_i32 = arith.constant 0 : i32
    %c0_i32_0 = arith.constant 0 : i32
    return %arg0, %c0_i32 : i32, i32
  }
  func.func @transform_22(%arg0: i32) -> (i32, i32, i32) {
    %c0_i32 = arith.constant 0 : i32
    %c0_i32_0 = arith.constant 0 : i32
    %c0_i32_1 = arith.constant 0 : i32
    return %arg0, %c0_i32, %c0_i32_0 : i32, i32, i32
  }
}

</mosaic_0001>

<llo_original>
// kernel: praxis_vae_forward.1
$region0: #{praxis_vae_forward.1}
  #allocation0 [shape = 'u32[]', space=smem, size = 0x4, offset = 0x4, fixed_abs, tag = 'smem constant byte address 0x4 - core index']
  #allocation1 [shape = 'u32[144,128]{1,0:T(1,128)}', space=vmem, size = 0x12000, scoped, tag = 'internal scratch']
  %s0 = inlined_call_operand.vmem [shape: bf16[16,32], index: 0, kind: input, shape index: {}]
  %s1 = inlined_call_operand.vmem [shape: f32[16,8], index: 1, kind: input, shape index: {}]
  %s2 = inlined_call_operand.vmem [shape: bf16[32,128], index: 2, kind: input, shape index: {}]
  %s3 = inlined_call_operand.vmem [shape: f32[1,128], index: 3, kind: input, shape index: {}]
  %s4 = inlined_call_operand.vmem [shape: bf16[128,128], index: 4, kind: input, shape index: {}]
  %s5 = inlined_call_operand.hbm [shape: f32[1,128], index: 5, kind: input, shape index: {}]
  %s6 = inlined_call_operand.vmem [shape: bf16[128,16], index: 6, kind: input, shape index: {}]
  %s7 = inlined_call_operand.hbm [shape: f32[1,16], index: 7, kind: input, shape index: {}]
  %s8 = inlined_call_operand.hbm [shape: bf16[8,128], index: 8, kind: input, shape index: {}]
  %s9 = inlined_call_operand.hbm [shape: f32[1,128], index: 9, kind: input, shape index: {}]
  %s10 = inlined_call_operand.vmem [shape: bf16[128,128], index: 10, kind: input, shape index: {}]
  %s11 = inlined_call_operand.hbm [shape: f32[1,128], index: 11, kind: input, shape index: {}]
  %s12 = inlined_call_operand.vmem [shape: bf16[128,32], index: 12, kind: input, shape index: {}]
  %s13 = inlined_call_operand.hbm [shape: f32[1,32], index: 13, kind: input, shape index: {}]
  %s14 = inlined_call_operand.vmem [shape: bf16[32,128], index: 14, kind: input, shape index: {}]
  %s15 = inlined_call_operand.hbm [shape: f32[1,128], index: 15, kind: input, shape index: {}]
  %s16 = inlined_call_operand.vmem [shape: bf16[128,128], index: 16, kind: input, shape index: {}]
  %s17 = inlined_call_operand.hbm [shape: f32[1,128], index: 17, kind: input, shape index: {}]
  %s18 = inlined_call_operand.vmem [shape: bf16[128,32], index: 18, kind: input, shape index: {}]
  %s19 = inlined_call_operand.hbm [shape: f32[1,32], index: 19, kind: input, shape index: {}]
  %s20 = inlined_call_operand.hbm [shape: f32[12], index: 20, kind: input, shape index: {}]
  %s21 = inlined_call_operand.hbm [shape: f32[16,32], index: 21, kind: output, shape index: {0}]
  %s22 = inlined_call_operand.vmem [shape: f32[2,8,128], index: 22, kind: output, shape index: {1}]
  %23 = xla_tuple %s21, %s22
  %s24 = sld [smem:[#allocation0]]
  $region165: #{praxis_vae_forward.1} parent=0
    _
  %s26 = ssub.s32 1, %s24
  %s27 = scalar_select 0, %s26, %s24
  $region1: #{praxis_vae_forward.1} parent=0
    #allocation2 [shape = 'u8[512]{0}', space=vmem, size = 0x400, scoped, tag = 'input window, operand 5, single buffered']
    #allocation3 [shape = 's32[2]{0}', space=sflag, size = 0x8, scoped, tag = 'scoped memory for praxis_vae_forward.1']
    #allocation4 [shape = 's32[2]{0}', space=sflag, size = 0x8, scoped, tag = 'scoped memory for praxis_vae_forward.1']
    #allocation5 [shape = 's32[2]{0}', space=sflag, size = 0x8, scoped, tag = 'scoped memory for praxis_vae_forward.1']
    #allocation6 [shape = 'u8[512]{0}', space=vmem, size = 0x400, scoped, tag = 'input window, operand 7, single buffered']
    #allocation7 [shape = 's32[1]{0}', space=sflag, size = 0x4, scoped, tag = 'scoped memory for praxis_vae_forward.1']
    #allocation8 [shape = 'u8[2048]{0}', space=vmem, size = 0x800, scoped, tag = 'input window, operand 8, single buffered']
    #allocation9 [shape = 'u8[512]{0}', space=vmem, size = 0x400, scoped, tag = 'input window, operand 9, single buffered']
    #allocation10 [shape = 's32[1]{0}', space=sflag, size = 0x4, scoped, tag = 'scoped memory for praxis_vae_forward.1']
    #allocation11 [shape = 'u8[512]{0}', space=vmem, size = 0x400, scoped, tag = 'input window, operand 11, single buffered']
    #allocation12 [shape = 'u8[512]{0}', space=vmem, size = 0x400, scoped, tag = 'input window, operand 13, single buffered']
    #allocation13 [shape = 's32[1]{0}', space=sflag, size = 0x4, scoped, tag = 'scoped memory for praxis_vae_forward.1']
    #allocation14 [shape = 'u8[512]{0}', space=vmem, size = 0x400, scoped, tag = 'input window, operand 15, single buffered']
    #allocation15 [shape = 'u8[512]{0}', space=vmem, size = 0x400, scoped, tag = 'input window, operand 17, single buffered']
    #allocation16 [shape = 's32[1]{0}', space=sflag, size = 0x4, scoped, tag = 'scoped memory for praxis_vae_forward.1']
    #allocation17 [shape = 'u8[512]{0}', space=vmem, size = 0x400, scoped, tag = 'input window, operand 19, single buffered']
    #allocation18 [shape = 'u8[512]{0}', space=smem, size = 0x200, scoped, tag = 'input window, operand 20, single buffered']
    #allocation19 [shape = 'u8[8192]{0}', space=vmem, size = 0x2000, scoped, tag = 'output window, operand 0']
    %28 = vsyncpa [#allocation3], 0
    %29 = vsyncpa [#allocation7], 0
    %30 = vsyncpa [#allocation10], 0
    %31 = vsyncpa [#allocation13], 0
    %32 = vsyncpa [#allocation16], 0
    %33 = vsyncpa [#allocation5], 0
    %34 = vsyncpa [#allocation4], 0
    %s35 = scalar_lea.sflag [#allocation4], 1
    %36 = vsyncpa %s35, 0
    loop: start=0, step=1, limit=4
    $region2: #{praxis_vae_forward.1} parent=1 // loop_pre_header
      _
    $region3: #{praxis_vae_forward.1} parent=1 // loop_header
      %s38 = sphi 0, %s42
      %p39 = scmp.ge.s32.totalorder %s38, 4
      %s48 = sphi 0, %s50
      %s51 = sphi 0, %s48
      %s52 = sphi 0, %s51
      %s68 = sphi 0, %s52
      %s74 = sphi 0, %s76
      %s77 = sphi 0, %s74
      %s78 = sphi 0, %s77
      %s94 = sphi 0, %s78
      %s98 = sphi 0, %s98
      %s100 = sphi 0, %s98
      %s101 = sphi 0, %s100
      %s115 = sphi 0, %s101
      %s119 = sphi 0, %s119
      %s121 = sphi 0, %s119
      %s122 = sphi 0, %s121
      %s136 = sphi 0, %s122
      %s140 = sphi 0, %s140
      %s142 = sphi 0, %s140
      %s143 = sphi 0, %s142
      %s157 = sphi 0, %s143
      %s161 = sphi 0, %s161
      %s163 = sphi 0, %s161
      %s164 = sphi 0, %s163
      %s178 = sphi 0, %s164
      %s182 = sphi 0, %s182
      %s184 = sphi 0, %s182
      %s185 = sphi 0, %s184
      %s199 = sphi 0, %s185
      %s203 = sphi 0, %s203
      %s205 = sphi 0, %s203
      %s206 = sphi 0, %s205
      %s220 = sphi 0, %s206
      %s224 = sphi 0, %s224
      %s226 = sphi 0, %s224
      %s227 = sphi 0, %s226
      %s241 = sphi 0, %s227
      %s245 = sphi 0, %s245
      %s247 = sphi 0, %s245
      %s248 = sphi 0, %s247
      %s262 = sphi 0, %s248
      %s266 = sphi 0, %s266
      %s268 = sphi 0, %s266
      %s269 = sphi 0, %s268
      %s283 = sphi 0, %s269
      %s287 = sphi 0, %s287
      %s289 = sphi 0, %s287
      %s290 = sphi 0, %s289
      %s304 = sphi 0, %s290
      %s308 = sphi 0, %s308
      %s310 = sphi 0, %s308
      %s311 = sphi 0, %s310
      %s325 = sphi 0, %s311
      %s329 = sphi 0, %s329
      %s331 = sphi 0, %s329
      %s332 = sphi 0, %s331
      %s346 = sphi 0, %s332
      %s350 = sphi 0, %s350
      %s352 = sphi 0, %s350
      %s353 = sphi 0, %s352
      %s367 = sphi 0, %s353
      %s371 = sphi 0, %s371
      %s373 = sphi 0, %s371
      %s374 = sphi 0, %s373
      %s388 = sphi 0, %s374
      %s392 = sphi 0, %s392
      %s394 = sphi 0, %s392
      %s395 = sphi 0, %s394
      %s409 = sphi 0, %s395
      %s413 = sphi 0, %s413
      %s415 = sphi 0, %s413
      %s416 = sphi 0, %s415
      %s430 = sphi 0, %s416
      %s434 = sphi 0, %s434
      %s436 = sphi 0, %s434
      %s437 = sphi 0, %s436
      %s451 = sphi 0, %s437
      %s455 = sphi 0, %s455
      %s457 = sphi 0, %s455
      %s458 = sphi 0, %s457
      %s472 = sphi 0, %s458
      %s476 = sphi 0, %s476
      %s478 = sphi 0, %s476
      %s479 = sphi 0, %s478
      %s493 = sphi 0, %s479
      %s499 = sphi 0, %s501
      %s502 = sphi 0, %s499
      %s503 = sphi 0, %s502
      %s519 = sphi 0, %s503
      %s525 = sphi 0, %s527
      %s528 = sphi 0, %s525
      %s529 = sphi 0, %s528
      %s545 = sphi 0, %s529
    $region4: #{praxis_vae_forward.1} parent=1 // loop_header_branch
      %41 = sbr.rel (%p39) target = $region8
    $region5: #{praxis_vae_forward.1} parent=1 // loop_body
      %s43 = ssub.s32 %s38, 1
      %s44 = ssub.s32 %s38, 2
      %s45 = sadd.s32 %s38, 1
      %s46 = ssub.s32 %s38, %s45
      %p47 = scmp.eq.s32.totalorder %s46, 0
      %s49 = sadd.s32 %s48, 1
      %s50 = scalar_select %p47, %s48, %s49
      %p53 = pneg %p47
      %p54 = scmp.eq.s32.totalorder %s38, 1
      %p55 = por %p53, %p54
      %p56 = scmp.ne.s32.totalorder %s48, %s51
      %p57 = scmp.eq.s32.totalorder %s38, 0
      %p58 = por %p56, %p57
      %p59 = scmp.ne.s32.totalorder %s48, %s51
      %p60 = scmp.eq.s32.totalorder %s43, 1
      %p61 = por %p59, %p60
      %p62 = scmp.ne.s32.totalorder %s51, %s52
      %p63 = scmp.eq.s32.totalorder %s43, 0
      %p64 = por %p62, %p63
      %p65 = scmp.ne.s32.totalorder %s51, %s52
      %p66 = scmp.eq.s32.totalorder %s44, 1
      %p67 = por %p65, %p66
      %p69 = scmp.ne.s32.totalorder %s52, %s68
      %p70 = scmp.eq.s32.totalorder %s44, 0
      %p71 = por %p69, %p70
      %s72 = ssub.s32 %s38, %s45
      %p73 = scmp.eq.s32.totalorder %s72, 0
      %s75 = sadd.s32 %s74, 1
      %s76 = scalar_select %p73, %s74, %s75
      %p79 = pneg %p73
      %p80 = scmp.eq.s32.totalorder %s38, 1
      %p81 = por %p79, %p80
      %p82 = scmp.ne.s32.totalorder %s74, %s77
      %p83 = scmp.eq.s32.totalorder %s38, 0
      %p84 = por %p82, %p83
      %p85 = scmp.ne.s32.totalorder %s74, %s77
      %p86 = scmp.eq.s32.totalorder %s43, 1
      %p87 = por %p85, %p86
      %p88 = scmp.ne.s32.totalorder %s77, %s78
      %p89 = scmp.eq.s32.totalorder %s43, 0
      %p90 = por %p88, %p89
      %p91 = scmp.ne.s32.totalorder %s77, %s78
      %p92 = scmp.eq.s32.totalorder %s44, 1
      %p93 = por %p91, %p92
      %p95 = scmp.ne.s32.totalorder %s78, %s94
      %p96 = scmp.eq.s32.totalorder %s44, 0
      %p97 = por %p95, %p96
      %s99 = sadd.s32 %s98, 1
      %p102 = scmp.eq.s32.totalorder %s38, 1
      %p103 = scmp.ne.s32.totalorder %s98, %s100
      %p104 = scmp.eq.s32.totalorder %s38, 0
      %p105 = por %p103, %p104
      %p106 = scmp.ne.s32.totalorder %s98, %s100
      %p107 = scmp.eq.s32.totalorder %s43, 1
      %p108 = por %p106, %p107
      %p109 = scmp.ne.s32.totalorder %s100, %s101
      %p110 = scmp.eq.s32.totalorder %s43, 0
      %p111 = por %p109, %p110
      %p112 = scmp.ne.s32.totalorder %s100, %s101
      %p113 = scmp.eq.s32.totalorder %s44, 1
      %p114 = por %p112, %p113
      %p116 = scmp.ne.s32.totalorder %s101, %s115
      %p117 = scmp.eq.s32.totalorder %s44, 0
      %p118 = por %p116, %p117
      %s120 = sadd.s32 %s119, 1
      %p123 = scmp.eq.s32.totalorder %s38, 1
      %p124 = scmp.ne.s32.totalorder %s119, %s121
      %p125 = scmp.eq.s32.totalorder %s38, 0
      %p126 = por %p124, %p125
      %p127 = scmp.ne.s32.totalorder %s119, %s121
      %p128 = scmp.eq.s32.totalorder %s43, 1
      %p129 = por %p127, %p128
      %p130 = scmp.ne.s32.totalorder %s121, %s122
      %p131 = scmp.eq.s32.totalorder %s43, 0
      %p132 = por %p130, %p131
      %p133 = scmp.ne.s32.totalorder %s121, %s122
      %p134 = scmp.eq.s32.totalorder %s44, 1
      %p135 = por %p133, %p134
      %p137 = scmp.ne.s32.totalorder %s122, %s136
      %p138 = scmp.eq.s32.totalorder %s44, 0
      %p139 = por %p137, %p138
      %s141 = sadd.s32 %s140, 1
      %p144 = scmp.eq.s32.totalorder %s38, 1
      %p145 = scmp.ne.s32.totalorder %s140, %s142
      %p146 = scmp.eq.s32.totalorder %s38, 0
      %p147 = por %p145, %p146
      %p148 = scmp.ne.s32.totalorder %s140, %s142
      %p149 = scmp.eq.s32.totalorder %s43, 1
      %p150 = por %p148, %p149
      %p151 = scmp.ne.s32.totalorder %s142, %s143
      %p152 = scmp.eq.s32.totalorder %s43, 0
      %p153 = por %p151, %p152
      %p154 = scmp.ne.s32.totalorder %s142, %s143
      %p155 = scmp.eq.s32.totalorder %s44, 1
      %p156 = por %p154, %p155
      %p158 = scmp.ne.s32.totalorder %s143, %s157
      %p159 = scmp.eq.s32.totalorder %s44, 0
      %p160 = por %p158, %p159
      %s162 = sadd.s32 %s161, 1
      %p165 = scmp.eq.s32.totalorder %s38, 1
      %p166 = scmp.ne.s32.totalorder %s161, %s163
      %p167 = scmp.eq.s32.totalorder %s38, 0
      %p168 = por %p166, %p167
      %p169 = scmp.ne.s32.totalorder %s161, %s163
      %p170 = scmp.eq.s32.totalorder %s43, 1
      %p171 = por %p169, %p170
      %p172 = scmp.ne.s32.totalorder %s163, %s164
      %p173 = scmp.eq.s32.totalorder %s43, 0
      %p174 = por %p172, %p173
      %p175 = scmp.ne.s32.totalorder %s163, %s164
      %p176 = scmp.eq.s32.totalorder %s44, 1
      %p177 = por %p175, %p176
      %p179 = scmp.ne.s32.totalorder %s164, %s178
      %p180 = scmp.eq.s32.totalorder %s44, 0
      %p181 = por %p179, %p180
      %s183 = sadd.s32 %s182, 1
      %p186 = scmp.eq.s32.totalorder %s38, 1
      %p187 = scmp.ne.s32.totalorder %s182, %s184
      %p188 = scmp.eq.s32.totalorder %s38, 0
      %p189 = por %p187, %p188
      %p190 = scmp.ne.s32.totalorder %s182, %s184
      %p191 = scmp.eq.s32.totalorder %s43, 1
      %p192 = por %p190, %p191
      %p193 = scmp.ne.s32.totalorder %s184, %s185
      %p194 = scmp.eq.s32.totalorder %s43, 0
      %p195 = por %p193, %p194
      %p196 = scmp.ne.s32.totalorder %s184, %s185
      %p197 = scmp.eq.s32.totalorder %s44, 1
      %p198 = por %p196, %p197
      %p200 = scmp.ne.s32.totalorder %s185, %s199
      %p201 = scmp.eq.s32.totalorder %s44, 0
      %p202 = por %p200, %p201
      %s204 = sadd.s32 %s203, 1
      %p207 = scmp.eq.s32.totalorder %s38, 1
      %p208 = scmp.ne.s32.totalorder %s203, %s205
      %p209 = scmp.eq.s32.totalorder %s38, 0
      %p210 = por %p208, %p209
      %p211 = scmp.ne.s32.totalorder %s203, %s205
      %p212 = scmp.eq.s32.totalorder %s43, 1
      %p213 = por %p211, %p212
      %p214 = scmp.ne.s32.totalorder %s205, %s206
      %p215 = scmp.eq.s32.totalorder %s43, 0
      %p216 = por %p214, %p215
      %p217 = scmp.ne.s32.totalorder %s205, %s206
      %p218 = scmp.eq.s32.totalorder %s44, 1
      %p219 = por %p217, %p218
      %p221 = scmp.ne.s32.totalorder %s206, %s220
      %p222 = scmp.eq.s32.totalorder %s44, 0
      %p223 = por %p221, %p222
      %s225 = sadd.s32 %s224, 1
      %p228 = scmp.eq.s32.totalorder %s38, 1
      %p229 = scmp.ne.s32.totalorder %s224, %s226
      %p230 = scmp.eq.s32.totalorder %s38, 0
      %p231 = por %p229, %p230
      %p232 = scmp.ne.s32.totalorder %s224, %s226
      %p233 = scmp.eq.s32.totalorder %s43, 1
      %p234 = por %p232, %p233
      %p235 = scmp.ne.s32.totalorder %s226, %s227
      %p236 = scmp.eq.s32.totalorder %s43, 0
      %p237 = por %p235, %p236
      %p238 = scmp.ne.s32.totalorder %s226, %s227
      %p239 = scmp.eq.s32.totalorder %s44, 1
      %p240 = por %p238, %p239
      %p242 = scmp.ne.s32.totalorder %s227, %s241
      %p243 = scmp.eq.s32.totalorder %s44, 0
      %p244 = por %p242, %p243
      %s246 = sadd.s32 %s245, 1
      %p249 = scmp.eq.s32.totalorder %s38, 1
      %p250 = scmp.ne.s32.totalorder %s245, %s247
      %p251 = scmp.eq.s32.totalorder %s38, 0
      %p252 = por %p250, %p251
      %p253 = scmp.ne.s32.totalorder %s245, %s247
      %p254 = scmp.eq.s32.totalorder %s43, 1
      %p255 = por %p253, %p254
      %p256 = scmp.ne.s32.totalorder %s247, %s248
      %p257 = scmp.eq.s32.totalorder %s43, 0
      %p258 = por %p256, %p257
      %p259 = scmp.ne.s32.totalorder %s247, %s248
      %p260 = scmp.eq.s32.totalorder %s44, 1
      %p261 = por %p259, %p260
      %p263 = scmp.ne.s32.totalorder %s248, %s262
      %p264 = scmp.eq.s32.totalorder %s44, 0
      %p265 = por %p263, %p264
      %s267 = sadd.s32 %s266, 1
      %p270 = scmp.eq.s32.totalorder %s38, 1
      %p271 = scmp.ne.s32.totalorder %s266, %s268
      %p272 = scmp.eq.s32.totalorder %s38, 0
      %p273 = por %p271, %p272
      %p274 = scmp.ne.s32.totalorder %s266, %s268
      %p275 = scmp.eq.s32.totalorder %s43, 1
      %p276 = por %p274, %p275
      %p277 = scmp.ne.s32.totalorder %s268, %s269
      %p278 = scmp.eq.s32.totalorder %s43, 0
      %p279 = por %p277, %p278
      %p280 = scmp.ne.s32.totalorder %s268, %s269
      %p281 = scmp.eq.s32.totalorder %s44, 1
      %p282 = por %p280, %p281
      %p284 = scmp.ne.s32.totalorder %s269, %s283
      %p285 = scmp.eq.s32.totalorder %s44, 0
      %p286 = por %p284, %p285
      %s288 = sadd.s32 %s287, 1
      %p291 = scmp.eq.s32.totalorder %s38, 1
      %p292 = scmp.ne.s32.totalorder %s287, %s289
      %p293 = scmp.eq.s32.totalorder %s38, 0
      %p294 = por %p292, %p293
      %p295 = scmp.ne.s32.totalorder %s287, %s289
      %p296 = scmp.eq.s32.totalorder %s43, 1
      %p297 = por %p295, %p296
      %p298 = scmp.ne.s32.totalorder %s289, %s290
      %p299 = scmp.eq.s32.totalorder %s43, 0
      %p300 = por %p298, %p299
      %p301 = scmp.ne.s32.totalorder %s289, %s290
      %p302 = scmp.eq.s32.totalorder %s44, 1
      %p303 = por %p301, %p302
      %p305 = scmp.ne.s32.totalorder %s290, %s304
      %p306 = scmp.eq.s32.totalorder %s44, 0
      %p307 = por %p305, %p306
      %s309 = sadd.s32 %s308, 1
      %p312 = scmp.eq.s32.totalorder %s38, 1
      %p313 = scmp.ne.s32.totalorder %s308, %s310
      %p314 = scmp.eq.s32.totalorder %s38, 0
      %p315 = por %p313, %p314
      %p316 = scmp.ne.s32.totalorder %s308, %s310
      %p317 = scmp.eq.s32.totalorder %s43, 1
      %p318 = por %p316, %p317
      %p319 = scmp.ne.s32.totalorder %s310, %s311
      %p320 = scmp.eq.s32.totalorder %s43, 0
      %p321 = por %p319, %p320
      %p322 = scmp.ne.s32.totalorder %s310, %s311
      %p323 = scmp.eq.s32.totalorder %s44, 1
      %p324 = por %p322, %p323
      %p326 = scmp.ne.s32.totalorder %s311, %s325
      %p327 = scmp.eq.s32.totalorder %s44, 0
      %p328 = por %p326, %p327
      %s330 = sadd.s32 %s329, 1
      %p333 = scmp.eq.s32.totalorder %s38, 1
      %p334 = scmp.ne.s32.totalorder %s329, %s331
      %p335 = scmp.eq.s32.totalorder %s38, 0
      %p336 = por %p334, %p335
      %p337 = scmp.ne.s32.totalorder %s329, %s331
      %p338 = scmp.eq.s32.totalorder %s43, 1
      %p339 = por %p337, %p338
      %p340 = scmp.ne.s32.totalorder %s331, %s332
      %p341 = scmp.eq.s32.totalorder %s43, 0
      %p342 = por %p340, %p341
      %p343 = scmp.ne.s32.totalorder %s331, %s332
      %p344 = scmp.eq.s32.totalorder %s44, 1
      %p345 = por %p343, %p344
      %p347 = scmp.ne.s32.totalorder %s332, %s346
      %p348 = scmp.eq.s32.totalorder %s44, 0
      %p349 = por %p347, %p348
      %s351 = sadd.s32 %s350, 1
      %p354 = scmp.eq.s32.totalorder %s38, 1
      %p355 = scmp.ne.s32.totalorder %s350, %s352
      %p356 = scmp.eq.s32.totalorder %s38, 0
      %p357 = por %p355, %p356
      %p358 = scmp.ne.s32.totalorder %s350, %s352
      %p359 = scmp.eq.s32.totalorder %s43, 1
      %p360 = por %p358, %p359
      %p361 = scmp.ne.s32.totalorder %s352, %s353
      %p362 = scmp.eq.s32.totalorder %s43, 0
      %p363 = por %p361, %p362
      %p364 = scmp.ne.s32.totalorder %s352, %s353
      %p365 = scmp.eq.s32.totalorder %s44, 1
      %p366 = por %p364, %p365
      %p368 = scmp.ne.s32.totalorder %s353, %s367
      %p369 = scmp.eq.s32.totalorder %s44, 0
      %p370 = por %p368, %p369
      %s372 = sadd.s32 %s371, 1
      %p375 = scmp.eq.s32.totalorder %s38, 1
      %p376 = scmp.ne.s32.totalorder %s371, %s373
      %p377 = scmp.eq.s32.totalorder %s38, 0
      %p378 = por %p376, %p377
      %p379 = scmp.ne.s32.totalorder %s371, %s373
      %p380 = scmp.eq.s32.totalorder %s43, 1
      %p381 = por %p379, %p380
      %p382 = scmp.ne.s32.totalorder %s373, %s374
      %p383 = scmp.eq.s32.totalorder %s43, 0
      %p384 = por %p382, %p383
      %p385 = scmp.ne.s32.totalorder %s373, %s374
      %p386 = scmp.eq.s32.totalorder %s44, 1
      %p387 = por %p385, %p386
      %p389 = scmp.ne.s32.totalorder %s374, %s388
      %p390 = scmp.eq.s32.totalorder %s44, 0
      %p391 = por %p389, %p390
      %s393 = sadd.s32 %s392, 1
      %p396 = scmp.eq.s32.totalorder %s38, 1
      %p397 = scmp.ne.s32.totalorder %s392, %s394
      %p398 = scmp.eq.s32.totalorder %s38, 0
      %p399 = por %p397, %p398
      %p400 = scmp.ne.s32.totalorder %s392, %s394
      %p401 = scmp.eq.s32.totalorder %s43, 1
      %p402 = por %p400, %p401
      %p403 = scmp.ne.s32.totalorder %s394, %s395
      %p404 = scmp.eq.s32.totalorder %s43, 0
      %p405 = por %p403, %p404
      %p406 = scmp.ne.s32.totalorder %s394, %s395
      %p407 = scmp.eq.s32.totalorder %s44, 1
      %p408 = por %p406, %p407
      %p410 = scmp.ne.s32.totalorder %s395, %s409
      %p411 = scmp.eq.s32.totalorder %s44, 0
      %p412 = por %p410, %p411
      %s414 = sadd.s32 %s413, 1
      %p417 = scmp.eq.s32.totalorder %s38, 1
      %p418 = scmp.ne.s32.totalorder %s413, %s415
      %p419 = scmp.eq.s32.totalorder %s38, 0
      %p420 = por %p418, %p419
      %p421 = scmp.ne.s32.totalorder %s413, %s415
      %p422 = scmp.eq.s32.totalorder %s43, 1
      %p423 = por %p421, %p422
      %p424 = scmp.ne.s32.totalorder %s415, %s416
      %p425 = scmp.eq.s32.totalorder %s43, 0
      %p426 = por %p424, %p425
      %p427 = scmp.ne.s32.totalorder %s415, %s416
      %p428 = scmp.eq.s32.totalorder %s44, 1
      %p429 = por %p427, %p428
      %p431 = scmp.ne.s32.totalorder %s416, %s430
      %p432 = scmp.eq.s32.totalorder %s44, 0
      %p433 = por %p431, %p432
      %s435 = sadd.s32 %s434, 1
      %p438 = scmp.eq.s32.totalorder %s38, 1
      %p439 = scmp.ne.s32.totalorder %s434, %s436
      %p440 = scmp.eq.s32.totalorder %s38, 0
      %p441 = por %p439, %p440
      %p442 = scmp.ne.s32.totalorder %s434, %s436
      %p443 = scmp.eq.s32.totalorder %s43, 1
      %p444 = por %p442, %p443
      %p445 = scmp.ne.s32.totalorder %s436, %s437
      %p446 = scmp.eq.s32.totalorder %s43, 0
      %p447 = por %p445, %p446
      %p448 = scmp.ne.s32.totalorder %s436, %s437
      %p449 = scmp.eq.s32.totalorder %s44, 1
      %p450 = por %p448, %p449
      %p452 = scmp.ne.s32.totalorder %s437, %s451
      %p453 = scmp.eq.s32.totalorder %s44, 0
      %p454 = por %p452, %p453
      %s456 = sadd.s32 %s455, 1
      %p459 = scmp.eq.s32.totalorder %s38, 1
      %p460 = scmp.ne.s32.totalorder %s455, %s457
      %p461 = scmp.eq.s32.totalorder %s38, 0
      %p462 = por %p460, %p461
      %p463 = scmp.ne.s32.totalorder %s455, %s457
      %p464 = scmp.eq.s32.totalorder %s43, 1
      %p465 = por %p463, %p464
      %p466 = scmp.ne.s32.totalorder %s457, %s458
      %p467 = scmp.eq.s32.totalorder %s43, 0
      %p468 = por %p466, %p467
      %p469 = scmp.ne.s32.totalorder %s457, %s458
      %p470 = scmp.eq.s32.totalorder %s44, 1
      %p471 = por %p469, %p470
      %p473 = scmp.ne.s32.totalorder %s458, %s472
      %p474 = scmp.eq.s32.totalorder %s44, 0
      %p475 = por %p473, %p474
      %s477 = sadd.s32 %s476, 1
      %p480 = scmp.eq.s32.totalorder %s38, 1
      %p481 = scmp.ne.s32.totalorder %s476, %s478
      %p482 = scmp.eq.s32.totalorder %s38, 0
      %p483 = por %p481, %p482
      %p484 = scmp.ne.s32.totalorder %s476, %s478
      %p485 = scmp.eq.s32.totalorder %s43, 1
      %p486 = por %p484, %p485
      %p487 = scmp.ne.s32.totalorder %s478, %s479
      %p488 = scmp.eq.s32.totalorder %s43, 0
      %p489 = por %p487, %p488
      %p490 = scmp.ne.s32.totalorder %s478, %s479
      %p491 = scmp.eq.s32.totalorder %s44, 1
      %p492 = por %p490, %p491
      %p494 = scmp.ne.s32.totalorder %s479, %s493
      %p495 = scmp.eq.s32.totalorder %s44, 0
      %p496 = por %p494, %p495
      %s497 = ssub.s32 %s38, %s45
      %p498 = scmp.eq.s32.totalorder %s497, 0
      %s500 = sadd.s32 %s499, 1
      %s501 = scalar_select %p498, %s499, %s500
      %p504 = pneg %p498
      %p505 = scmp.eq.s32.totalorder %s38, 1
      %p506 = por %p504, %p505
      %p507 = scmp.ne.s32.totalorder %s499, %s502
      %p508 = scmp.eq.s32.totalorder %s38, 0
      %p509 = por %p507, %p508
      %p510 = scmp.ne.s32.totalorder %s499, %s502
      %p511 = scmp.eq.s32.totalorder %s43, 1
      %p512 = por %p510, %p511
      %p513 = scmp.ne.s32.totalorder %s502, %s503
      %p514 = scmp.eq.s32.totalorder %s43, 0
      %p515 = por %p513, %p514
      %p516 = scmp.ne.s32.totalorder %s502, %s503
      %p517 = scmp.eq.s32.totalorder %s44, 1
      %p518 = por %p516, %p517
      %p520 = scmp.ne.s32.totalorder %s503, %s519
      %p521 = scmp.eq.s32.totalorder %s44, 0
      %p522 = por %p520, %p521
      %s523 = ssub.s32 %s38, %s45
      %p524 = scmp.eq.s32.totalorder %s523, 0
      %s526 = sadd.s32 %s525, 1
      %s527 = scalar_select %p524, %s525, %s526
      %p530 = pneg %p524
      %p531 = scmp.eq.s32.totalorder %s38, 1
      %p532 = por %p530, %p531
      %p533 = scmp.ne.s32.totalorder %s525, %s528
      %p534 = scmp.eq.s32.totalorder %s38, 0
      %p535 = por %p533, %p534
      %p536 = scmp.ne.s32.totalorder %s525, %s528
      %p537 = scmp.eq.s32.totalorder %s43, 1
      %p538 = por %p536, %p537
      %p539 = scmp.ne.s32.totalorder %s528, %s529
      %p540 = scmp.eq.s32.totalorder %s43, 0
      %p541 = por %p539, %p540
      %p542 = scmp.ne.s32.totalorder %s528, %s529
      %p543 = scmp.eq.s32.totalorder %s44, 1
      %p544 = por %p542, %p543
      %p546 = scmp.ne.s32.totalorder %s529, %s545
      %p547 = scmp.eq.s32.totalorder %s44, 0
      %p548 = por %p546, %p547
      %p549 = scmp.le.s32.totalorder 1, %s38
      %p550 = scmp.lt.s32.totalorder %s38, 3
      %p551 = pnand %p549, %p550
      %p552 = pneg %p551
      // Predicated region
      $region9: #{praxis_vae_forward.1} parent=5 // pred_check
        _
      $region10: #{praxis_vae_forward.1} parent=5 // pred_check_branch
        %554 = sbr.rel (%p551) target = $region12
      $region11: #{praxis_vae_forward.1} parent=5 // pred_region
        %s555 = ssub.s32 %s38, 1
        // Predicated region
        $region13: #{praxis_vae_forward.1} parent=11 // pred_check
          %p556 = pneg %p111
        $region14: #{praxis_vae_forward.1} parent=11 // pred_check_branch
          %558 = sbr.rel (%p556) target = $region16
        $region15: #{praxis_vae_forward.1} parent=11 // pred_region
          _
        $region16: #{praxis_vae_forward.1} parent=11 // pred_fallthru
          _
        // Predicated region
        $region17: #{praxis_vae_forward.1} parent=11 // pred_check
          %p559 = pneg %p132
        $region18: #{praxis_vae_forward.1} parent=11 // pred_check_branch
          %561 = sbr.rel (%p559) target = $region20
        $region19: #{praxis_vae_forward.1} parent=11 // pred_region
          _
        $region20: #{praxis_vae_forward.1} parent=11 // pred_fallthru
          _
        // Predicated region
        $region21: #{praxis_vae_forward.1} parent=11 // pred_check
          %p562 = pneg %p153
        $region22: #{praxis_vae_forward.1} parent=11 // pred_check_branch
          %564 = sbr.rel (%p562) target = $region24
        $region23: #{praxis_vae_forward.1} parent=11 // pred_region
          _
        $region24: #{praxis_vae_forward.1} parent=11 // pred_fallthru
          _
        // Predicated region
        $region25: #{praxis_vae_forward.1} parent=11 // pred_check
          %p565 = pneg %p174
        $region26: #{praxis_vae_forward.1} parent=11 // pred_check_branch
          %567 = sbr.rel (%p565) target = $region28
        $region27: #{praxis_vae_forward.1} parent=11 // pred_region
          %s569 = ssub.s32 16, 16
          %570 = vsyncadd [#allocation3], %s569
          %s572 = sshll.u32 [#allocation2], 4
          %s573 = int_to_ptr.vmem [resolvable:$true] %s572
          %575 = dma.hbm_to_vmem [thread:$0]  %s5, 16, %s573, [#allocation3]
        $region28: #{praxis_vae_forward.1} parent=11 // pred_fallthru
          _
        // Predicated region
        $region29: #{praxis_vae_forward.1} parent=11 // pred_check
          %p576 = pneg %p195
        $region30: #{praxis_vae_forward.1} parent=11 // pred_check_branch
          %578 = sbr.rel (%p576) target = $region32
        $region31: #{praxis_vae_forward.1} parent=11 // pred_region
          _
        $region32: #{praxis_vae_forward.1} parent=11 // pred_fallthru
          _
        // Predicated region
        $region33: #{praxis_vae_forward.1} parent=11 // pred_check
          %p579 = pneg %p216
        $region34: #{praxis_vae_forward.1} parent=11 // pred_check_branch
          %581 = sbr.rel (%p579) target = $region36
        $region35: #{praxis_vae_forward.1} parent=11 // pred_region
          %s583 = ssub.s32 16, 16
          %584 = vsyncadd [#allocation7], %s583
          %s586 = sshll.u32 [#allocation6], 4
          %s587 = int_to_ptr.vmem [resolvable:$true] %s586
          %589 = dma.hbm_to_vmem [thread:$0]  %s7, 16, %s587, [#allocation7]
        $region36: #{praxis_vae_forward.1} parent=11 // pred_fallthru
          _
        // Predicated region
        $region37: #{praxis_vae_forward.1} parent=11 // pred_check
          %p590 = pneg %p237
        $region38: #{praxis_vae_forward.1} parent=11 // pred_check_branch
          %592 = sbr.rel (%p590) target = $region40
        $region39: #{praxis_vae_forward.1} parent=11 // pred_region
          %s594 = ssub.s32 64, 64
          %595 = vsyncadd [#allocation7], %s594
          %s597 = sshll.u32 [#allocation8], 4
          %s598 = int_to_ptr.vmem [resolvable:$true] %s597
          %600 = dma.hbm_to_vmem [thread:$0]  %s8, 64, %s598, [#allocation7]
        $region40: #{praxis_vae_forward.1} parent=11 // pred_fallthru
          _
        // Predicated region
        $region41: #{praxis_vae_forward.1} parent=11 // pred_check
          %p601 = pneg %p258
        $region42: #{praxis_vae_forward.1} parent=11 // pred_check_branch
          %603 = sbr.rel (%p601) target = $region44
        $region43: #{praxis_vae_forward.1} parent=11 // pred_region
          %s605 = ssub.s32 16, 16
          %606 = vsyncadd [#allocation10], %s605
          %s608 = sshll.u32 [#allocation9], 4
          %s609 = int_to_ptr.vmem [resolvable:$true] %s608
          %611 = dma.hbm_to_vmem [thread:$0]  %s9, 16, %s609, [#allocation10]
        $region44: #{praxis_vae_forward.1} parent=11 // pred_fallthru
          _
        // Predicated region
        $region45: #{praxis_vae_forward.1} parent=11 // pred_check
          %p612 = pneg %p279
        $region46: #{praxis_vae_forward.1} parent=11 // pred_check_branch
          %614 = sbr.rel (%p612) target = $region48
        $region47: #{praxis_vae_forward.1} parent=11 // pred_region
          _
        $region48: #{praxis_vae_forward.1} parent=11 // pred_fallthru
          _
        // Predicated region
        $region49: #{praxis_vae_forward.1} parent=11 // pred_check
          %p615 = pneg %p300
        $region50: #{praxis_vae_forward.1} parent=11 // pred_check_branch
          %617 = sbr.rel (%p615) target = $region52
        $region51: #{praxis_vae_forward.1} parent=11 // pred_region
          %s619 = ssub.s32 16, 16
          %620 = vsyncadd [#allocation10], %s619
          %s622 = sshll.u32 [#allocation11], 4
          %s623 = int_to_ptr.vmem [resolvable:$true] %s622
          %625 = dma.hbm_to_vmem [thread:$0]  %s11, 16, %s623, [#allocation10]
        $region52: #{praxis_vae_forward.1} parent=11 // pred_fallthru
          _
        // Predicated region
        $region53: #{praxis_vae_forward.1} parent=11 // pred_check
          %p626 = pneg %p321
        $region54: #{praxis_vae_forward.1} parent=11 // pred_check_branch
          %628 = sbr.rel (%p626) target = $region56
        $region55: #{praxis_vae_forward.1} parent=11 // pred_region
          _
        $region56: #{praxis_vae_forward.1} parent=11 // pred_fallthru
          _
        // Predicated region
        $region57: #{praxis_vae_forward.1} parent=11 // pred_check
          %p629 = pneg %p342
        $region58: #{praxis_vae_forward.1} parent=11 // pred_check_branch
          %631 = sbr.rel (%p629) target = $region60
        $region59: #{praxis_vae_forward.1} parent=11 // pred_region
          %s633 = ssub.s32 16, 16
          %634 = vsyncadd [#allocation13], %s633
          %s636 = sshll.u32 [#allocation12], 4
          %s637 = int_to_ptr.vmem [resolvable:$true] %s636
          %639 = dma.hbm_to_vmem [thread:$0]  %s13, 16, %s637, [#allocation13]
        $region60: #{praxis_vae_forward.1} parent=11 // pred_fallthru
          _
        // Predicated region
        $region61: #{praxis_vae_forward.1} parent=11 // pred_check
          %p640 = pneg %p363
        $region62: #{praxis_vae_forward.1} parent=11 // pred_check_branch
          %642 = sbr.rel (%p640) target = $region64
        $region63: #{praxis_vae_forward.1} parent=11 // pred_region
          _
        $region64: #{praxis_vae_forward.1} parent=11 // pred_fallthru
          _
        // Predicated region
        $region65: #{praxis_vae_forward.1} parent=11 // pred_check
          %p643 = pneg %p384
        $region66: #{praxis_vae_forward.1} parent=11 // pred_check_branch
          %645 = sbr.rel (%p643) target = $region68
        $region67: #{praxis_vae_forward.1} parent=11 // pred_region
          %s647 = ssub.s32 16, 16
          %648 = vsyncadd [#allocation13], %s647
          %s650 = sshll.u32 [#allocation14], 4
          %s651 = int_to_ptr.vmem [resolvable:$true] %s650
          %653 = dma.hbm_to_vmem [thread:$0]  %s15, 16, %s651, [#allocation13]
        $region68: #{praxis_vae_forward.1} parent=11 // pred_fallthru
          _
        // Predicated region
        $region69: #{praxis_vae_forward.1} parent=11 // pred_check
          %p654 = pneg %p405
        $region70: #{praxis_vae_forward.1} parent=11 // pred_check_branch
          %656 = sbr.rel (%p654) target = $region72
        $region71: #{praxis_vae_forward.1} parent=11 // pred_region
          _
        $region72: #{praxis_vae_forward.1} parent=11 // pred_fallthru
          _
        // Predicated region
        $region73: #{praxis_vae_forward.1} parent=11 // pred_check
          %p657 = pneg %p426
        $region74: #{praxis_vae_forward.1} parent=11 // pred_check_branch
          %659 = sbr.rel (%p657) target = $region76
        $region75: #{praxis_vae_forward.1} parent=11 // pred_region
          %s661 = ssub.s32 16, 16
          %662 = vsyncadd [#allocation16], %s661
          %s664 = sshll.u32 [#allocation15], 4
          %s665 = int_to_ptr.vmem [resolvable:$true] %s664
          %667 = dma.hbm_to_vmem [thread:$0]  %s17, 16, %s665, [#allocation16]
        $region76: #{praxis_vae_forward.1} parent=11 // pred_fallthru
          _
        // Predicated region
        $region77: #{praxis_vae_forward.1} parent=11 // pred_check
          %p668 = pneg %p447
        $region78: #{praxis_vae_forward.1} parent=11 // pred_check_branch
          %670 = sbr.rel (%p668) target = $region80
        $region79: #{praxis_vae_forward.1} parent=11 // pred_region
          _
        $region80: #{praxis_vae_forward.1} parent=11 // pred_fallthru
          _
        // Predicated region
        $region81: #{praxis_vae_forward.1} parent=11 // pred_check
          %p671 = pneg %p468
        $region82: #{praxis_vae_forward.1} parent=11 // pred_check_branch
          %673 = sbr.rel (%p671) target = $region84
        $region83: #{praxis_vae_forward.1} parent=11 // pred_region
          %s675 = ssub.s32 16, 16
          %676 = vsyncadd [#allocation16], %s675
          %s678 = sshll.u32 [#allocation17], 4
          %s679 = int_to_ptr.vmem [resolvable:$true] %s678
          %681 = dma.hbm_to_vmem [thread:$0]  %s19, 16, %s679, [#allocation16]
        $region84: #{praxis_vae_forward.1} parent=11 // pred_fallthru
          _
        // Predicated region
        $region85: #{praxis_vae_forward.1} parent=11 // pred_check
          %p682 = pneg %p489
        $region86: #{praxis_vae_forward.1} parent=11 // pred_check_branch
          %684 = sbr.rel (%p682) target = $region88
        $region87: #{praxis_vae_forward.1} parent=11 // pred_region
          %s686 = ssub.s32 16, 16
          %687 = vsyncadd [#allocation5], %s686
          %690 = dma.hbm_to_smem %s20, 16, [#allocation18], [#allocation5]
        $region88: #{praxis_vae_forward.1} parent=11 // pred_fallthru
          _
      $region12: #{praxis_vae_forward.1} parent=5 // pred_fallthru
        _
      %p691 = scmp.lt.s32.totalorder %s38, 2
      // Predicated region
      $region89: #{praxis_vae_forward.1} parent=5 // pred_check
        %p692 = pneg %p691
      $region90: #{praxis_vae_forward.1} parent=5 // pred_check_branch
        %694 = sbr.rel (%p692) target = $region92
      $region91: #{praxis_vae_forward.1} parent=5 // pred_region
        // Predicated region
        $region93: #{praxis_vae_forward.1} parent=91 // pred_check
          %p695 = pneg %p58
        $region94: #{praxis_vae_forward.1} parent=91 // pred_check_branch
          %697 = sbr.rel (%p695) target = $region96
        $region95: #{praxis_vae_forward.1} parent=91 // pred_region
          %p698 = scmp.lt.s32.totalorder %s38, 1
          %s699 = scalar_select %p698, %s38, 1
          %s700 = smul.addr %s699, 4
          %s701 = scalar_lea.vmem %s0, %s700
        $region96: #{praxis_vae_forward.1} parent=91 // pred_fallthru
          _
        // Predicated region
        $region97: #{praxis_vae_forward.1} parent=91 // pred_check
          %p702 = pneg %p84
        $region98: #{praxis_vae_forward.1} parent=91 // pred_check_branch
          %704 = sbr.rel (%p702) target = $region100
        $region99: #{praxis_vae_forward.1} parent=91 // pred_region
          %p705 = scmp.lt.s32.totalorder %s38, 1
          %s706 = scalar_select %p705, %s38, 1
          %s707 = smul.addr %s706, 8
          %s708 = scalar_lea.vmem %s1, %s707
        $region100: #{praxis_vae_forward.1} parent=91 // pred_fallthru
          _
      $region92: #{praxis_vae_forward.1} parent=5 // pred_fallthru
        _
      %p709 = scmp.le.s32.totalorder 1, %s38
      %p710 = scmp.lt.s32.totalorder %s38, 3
      %p711 = pnand %p709, %p710
      %p712 = pneg %p711
      // Predicated region
      $region101: #{praxis_vae_forward.1} parent=5 // pred_check
        _
      $region102: #{praxis_vae_forward.1} parent=5 // pred_check_branch
        %714 = sbr.rel (%p711) target = $region104
      $region103: #{praxis_vae_forward.1} parent=5 // pred_region
        %s715 = ssub.s32 %s38, 1
        // Predicated region
        $region105: #{praxis_vae_forward.1} parent=103 // pred_check
          %p716 = pneg %p174
        $region106: #{praxis_vae_forward.1} parent=103 // pred_check_branch
          %718 = sbr.rel (%p716) target = $region108
        $region107: #{praxis_vae_forward.1} parent=103 // pred_region
          %719 = dma.done [#allocation3], 16
        $region108: #{praxis_vae_forward.1} parent=103 // pred_fallthru
          _
        // Predicated region
        $region109: #{praxis_vae_forward.1} parent=103 // pred_check
          %p720 = pneg %p216
        $region110: #{praxis_vae_forward.1} parent=103 // pred_check_branch
          %722 = sbr.rel (%p720) target = $region112
        $region111: #{praxis_vae_forward.1} parent=103 // pred_region
          %723 = dma.done [#allocation7], 16
        $region112: #{praxis_vae_forward.1} parent=103 // pred_fallthru
          _
        // Predicated region
        $region113: #{praxis_vae_forward.1} parent=103 // pred_check
          %p724 = pneg %p237
        $region114: #{praxis_vae_forward.1} parent=103 // pred_check_branch
          %726 = sbr.rel (%p724) target = $region116
        $region115: #{praxis_vae_forward.1} parent=103 // pred_region
          %727 = dma.done [#allocation7], 64
        $region116: #{praxis_vae_forward.1} parent=103 // pred_fallthru
          _
        // Predicated region
        $region117: #{praxis_vae_forward.1} parent=103 // pred_check
          %p728 = pneg %p258
        $region118: #{praxis_vae_forward.1} parent=103 // pred_check_branch
          %730 = sbr.rel (%p728) target = $region120
        $region119: #{praxis_vae_forward.1} parent=103 // pred_region
          %731 = dma.done [#allocation10], 16
        $region120: #{praxis_vae_forward.1} parent=103 // pred_fallthru
          _
        // Predicated region
        $region121: #{praxis_vae_forward.1} parent=103 // pred_check
          %p732 = pneg %p300
        $region122: #{praxis_vae_forward.1} parent=103 // pred_check_branch
          %734 = sbr.rel (%p732) target = $region124
        $region123: #{praxis_vae_forward.1} parent=103 // pred_region
          %735 = dma.done [#allocation10], 16
        $region124: #{praxis_vae_forward.1} parent=103 // pred_fallthru
          _
        // Predicated region
        $region125: #{praxis_vae_forward.1} parent=103 // pred_check
          %p736 = pneg %p342
        $region126: #{praxis_vae_forward.1} parent=103 // pred_check_branch
          %738 = sbr.rel (%p736) target = $region128
        $region127: #{praxis_vae_forward.1} parent=103 // pred_region
          %739 = dma.done [#allocation13], 16
        $region128: #{praxis_vae_forward.1} parent=103 // pred_fallthru
          _
        // Predicated region
        $region129: #{praxis_vae_forward.1} parent=103 // pred_check
          %p740 = pneg %p384
        $region130: #{praxis_vae_forward.1} parent=103 // pred_check_branch
          %742 = sbr.rel (%p740) target = $region132
        $region131: #{praxis_vae_forward.1} parent=103 // pred_region
          %743 = dma.done [#allocation13], 16
        $region132: #{praxis_vae_forward.1} parent=103 // pred_fallthru
          _
        // Predicated region
        $region133: #{praxis_vae_forward.1} parent=103 // pred_check
          %p744 = pneg %p426
        $region134: #{praxis_vae_forward.1} parent=103 // pred_check_branch
          %746 = sbr.rel (%p744) target = $region136
        $region135: #{praxis_vae_forward.1} parent=103 // pred_region
          %747 = dma.done [#allocation16], 16
        $region136: #{praxis_vae_forward.1} parent=103 // pred_fallthru
          _
        // Predicated region
        $region137: #{praxis_vae_forward.1} parent=103 // pred_check
          %p748 = pneg %p468
        $region138: #{praxis_vae_forward.1} parent=103 // pred_check_branch
          %750 = sbr.rel (%p748) target = $region140
        $region139: #{praxis_vae_forward.1} parent=103 // pred_region
          %751 = dma.done [#allocation16], 16
        $region140: #{praxis_vae_forward.1} parent=103 // pred_fallthru
          _
        // Predicated region
        $region141: #{praxis_vae_forward.1} parent=103 // pred_check
          %p752 = pneg %p489
        $region142: #{praxis_vae_forward.1} parent=103 // pred_check_branch
          %754 = sbr.rel (%p752) target = $region144
        $region143: #{praxis_vae_forward.1} parent=103 // pred_region
          %755 = dma.done [#allocation5], 16
        $region144: #{praxis_vae_forward.1} parent=103 // pred_fallthru
          _
        %756 = sfence
        %p757 = scmp.lt.s32.totalorder %s43, 1
        %s758 = scalar_select %p757, %s43, 1
        %s759 = smul.addr %s758, 4
        %s760 = scalar_lea.vmem %s0, %s759
        %p761 = pneg %p64
        %p762 = pneg %p61
        %p763 = scmp.lt.s32.totalorder %s43, 1
        %s764 = scalar_select %p763, %s43, 1
        %s765 = smul.addr %s764, 8
        %s766 = scalar_lea.vmem %s1, %s765
        %p767 = pneg %p90
        %p768 = pneg %p87
        %p769 = pneg %p111
        %p770 = pneg %p108
        %p771 = pneg %p132
        %p772 = pneg %p129
        %p773 = pneg %p153
        %p774 = pneg %p150
        %p775 = pneg %p174
        %p776 = pneg %p171
        %p777 = pneg %p195
        %p778 = pneg %p192
        %p779 = pneg %p216
        %p780 = pneg %p213
        %p781 = pneg %p237
        %p782 = pneg %p234
        %p783 = pneg %p258
        %p784 = pneg %p255
        %p785 = pneg %p279
        %p786 = pneg %p276
        %p787 = pneg %p300
        %p788 = pneg %p297
        %p789 = pneg %p321
        %p790 = pneg %p318
        %p791 = pneg %p342
        %p792 = pneg %p339
        %p793 = pneg %p363
        %p794 = pneg %p360
        %p795 = pneg %p384
        %p796 = pneg %p381
        %p797 = pneg %p405
        %p798 = pneg %p402
        %p799 = pneg %p426
        %p800 = pneg %p423
        %p801 = pneg %p447
        %p802 = pneg %p444
        %p803 = pneg %p468
        %p804 = pneg %p465
        %p805 = pneg %p489
        %p806 = pneg %p486
        %p807 = pneg %p515
        %p808 = pneg %p512
        %s809 = sand.u32 %s502, 1
        %s810 = scalar_lea.sflag [#allocation4], %s809
        %s811 = sand.u32 %s502, 1
        %s812 = smul.addr %s811, 8
        %s813 = scalar_lea.vmem [#allocation19], %s812
        %p814 = pneg %p541
        %p815 = pneg %p538
        %p816 = scmp.lt.s32.totalorder %s43, 1
        %s817 = scalar_select %p816, %s43, 1
        %s818 = smul.addr %s817, 8
        %s819 = scalar_lea.vmem %s22, %s818
        %p820 = scmp.lt.s32.totalorder %s43, 1
        %s821 = scalar_select %p820, %s43, 1
        %s822 = smul.addr %s821, 4
        %s823 = scalar_lea.vmem %s0, %s822
        %p824 = scmp.lt.s32.totalorder %s43, 1
        %s825 = scalar_select %p824, %s43, 1
        %s826 = smul.addr %s825, 8
        %s827 = scalar_lea.vmem %s1, %s826
        %p828 = scmp.lt.s32.totalorder %s43, 1
        %s829 = scalar_select %p828, %s43, 1
        %s830 = smul.addr %s829, 8
        %s831 = scalar_lea.vmem %s22, %s830
        %v833 = vld [vmem:[%s823] sm:$0xf]
        %v834 = vld [vmem:[%s2] sm:$0xf]
        %v835 = vld [vmem:[%s2 + $0x4] sm:$0xf]
        %v836 = vld [vmem:[%s2 + $0x8] sm:$0xf]
        %v837 = vld [vmem:[%s2 + $0xc] sm:$0xf]
        %v838 = vld [vmem:[%s3] sm:$0x1]
        %v840 = vlaneseq
        %v841 = vshrl.u32 %v840, 7
        %v842 = vsub.s32 0, %v841
        %v843 = vrot.slane %v838, %v842
        %v849 = vunpack.c.l.b16 %v834
        %v850 = vunpack.c.l.b16 %v835
        %v851 = vunpack.c.l.b16 %v836
        %v852 = vunpack.c.l.b16 %v837
        %v853 = vpack.c.b16 %v850, %v849
        %v854 = vpack.c.b16 %v852, %v851
        %vm857 = vcmask 261120
        %v859 = vsel %vm857, %v833, 0
        %861 = vmatprep.subr.bf16.mxu0 0
        %862 = vmatpush1.bf16.msra.mxu0 0
        %863 = vmatprep.subr.bf16.mxu0 0
        %864 = vmatpush1.bf16.msra.mxu0 0
        %865 = vmatprep.subr.bf16.mxu0 0
        %866 = vmatpush1.bf16.msra.mxu0 0
        %867 = vmatprep.subr.bf16.mxu0 0
        %868 = vmatpush1.bf16.msra.mxu0 0
        %869 = vmatprep.subr.bf16.mxu0 0
        %870 = vmatpush1.bf16.msra.mxu0 0
        %871 = vmatprep.subr.bf16.mxu0 0
        %872 = vmatpush1.bf16.msra.mxu0 0
        %873 = vmatprep.subr.bf16.mxu0 0
        %874 = vmatpush1.bf16.msra.mxu0 %v854
        %875 = vmatprep.subr.bf16.mxu0 0
        %876 = vmatpush1.bf16.msra.mxu0 %v853
        %877 = vmatprep.subr.bf16.mxu0 0
        %878 = vmatpush2.bf16.msra.mxu0 0
        %879 = vmatprep.subr.bf16.mxu0 0
        %880 = vmatpush2.bf16.msra.mxu0 0
        %881 = vmatprep.subr.bf16.mxu0 0
        %882 = vmatpush2.bf16.msra.mxu0 0
        %883 = vmatprep.subr.bf16.mxu0 0
        %884 = vmatpush2.bf16.msra.mxu0 0
        %885 = vmatprep.subr.bf16.mxu0 0
        %886 = vmatpush2.bf16.msra.mxu0 0
        %887 = vmatprep.subr.bf16.mxu0 0
        %888 = vmatpush2.bf16.msra.mxu0 0
        %889 = vmatprep.subr.bf16.mxu0 0
        %890 = vmatpush2.bf16.msra.mxu0 0
        %891 = vmatprep.subr.bf16.mxu0 0
        %892 = vmatpush2.bf16.msra.mxu0 0
        %893 = vmatprep.mubr.bf16.mxu0 0
        %894 = vmatmul.mubr.bf16.gmra.mxu0 %v859
        %v895 = vpop.f32.mrf.mxu0
        %v896 = vadd.f32 %v843, %v895
        %v897 = vpop.f32.mrf.mxu0
        %v898 = vpop.f32.mrf.mxu0
        %v899 = vpop.f32.mrf.mxu0
        %900 = vdwg.mxu0
        %s901 = sld [smem:[#allocation18]]
        %s902 = sld [smem:[#allocation18 + $0x6]]
        %v903 = vstv %s902
        %v904 = vmul.f32 %v896, %v903
        %v905 = vpack.c.bf16 %v904, %v904
        %v906 = vtanh.bf16.pop %v905
        %p908 = scmp.ne.f32.partialorder %s901, %s901
        %s909 = sshrl.u32 %s901, 16
        %s910 = sand.u32 %s909, 1
        %s911 = sadd.s32 32767, %s910
        %s912 = sadd.s32 %s901, %s911
        %s913 = sand.u32 %s912, 4294901760
        %s914 = scalar_select %p908, 2143289344, %s913
        %s916 = sshrl.u32 %s914, 16
        %s917 = sshll.u32 %s916, 16
        %s918 = sor.u32 %s916, %s917
        %v919 = vstv %s918
        %v921 = vmul.bf16 %v906, %v919
        %v922 = vld [vmem:[%s4] sm:$0xf]
        %v923 = vld [vmem:[%s4 + $0x4] sm:$0xf]
        %v924 = vld [vmem:[%s4 + $0x8] sm:$0xf]
        %v925 = vld [vmem:[%s4 + $0xc] sm:$0xf]
        %v926 = vld [vmem:[%s4 + $0x10] sm:$0xf]
        %v927 = vld [vmem:[%s4 + $0x14] sm:$0xf]
        %v928 = vld [vmem:[%s4 + $0x18] sm:$0xf]
        %v929 = vld [vmem:[%s4 + $0x1c] sm:$0xf]
        %v930 = vld [vmem:[%s4 + $0x20] sm:$0xf]
        %v931 = vld [vmem:[%s4 + $0x24] sm:$0xf]
        %v932 = vld [vmem:[%s4 + $0x28] sm:$0xf]
        %v933 = vld [vmem:[%s4 + $0x2c] sm:$0xf]
        %v934 = vld [vmem:[%s4 + $0x30] sm:$0xf]
        %v935 = vld [vmem:[%s4 + $0x34] sm:$0xf]
        %v936 = vld [vmem:[%s4 + $0x38] sm:$0xf]
        %v937 = vld [vmem:[%s4 + $0x3c] sm:$0xf]
        %v938 = vld [vmem:[#allocation2] sm:$0x1]
        %v940 = vlaneseq
        %v941 = vshrl.u32 %v940, 7
        %v942 = vsub.s32 0, %v941
        %v943 = vrot.slane %v938, %v942
        %v961 = vunpack.c.l.b16 %v922
        %v962 = vunpack.c.l.b16 %v923
        %v963 = vunpack.c.l.b16 %v924
        %v964 = vunpack.c.l.b16 %v925
        %v965 = vunpack.c.l.b16 %v926
        %v966 = vunpack.c.l.b16 %v927
        %v967 = vunpack.c.l.b16 %v928
        %v968 = vunpack.c.l.b16 %v929
        %v969 = vunpack.c.l.b16 %v930
        %v970 = vunpack.c.l.b16 %v931
        %v971 = vunpack.c.l.b16 %v932
        %v972 = vunpack.c.l.b16 %v933
        %v973 = vunpack.c.l.b16 %v934
        %v974 = vunpack.c.l.b16 %v935
        %v975 = vunpack.c.l.b16 %v936
        %v976 = vunpack.c.l.b16 %v937
        %v977 = vpack.c.b16 %v962, %v961
        %v978 = vpack.c.b16 %v964, %v963
        %v979 = vpack.c.b16 %v966, %v965
        %v980 = vpack.c.b16 %v968, %v967
        %v981 = vpack.c.b16 %v970, %v969
        %v982 = vpack.c.b16 %v972, %v971
        %v983 = vpack.c.b16 %v974, %v973
        %v984 = vpack.c.b16 %v976, %v975
        %993 = vmatprep.subr.bf16.mxu0 0
        %994 = vmatpush1.bf16.msra.mxu0 %v984
        %995 = vmatprep.subr.bf16.mxu0 0
        %996 = vmatpush1.bf16.msra.mxu0 %v983
        %997 = vmatprep.subr.bf16.mxu0 0
        %998 = vmatpush1.bf16.msra.mxu0 %v982
        %999 = vmatprep.subr.bf16.mxu0 0
        %1000 = vmatpush1.bf16.msra.mxu0 %v981
        %1001 = vmatprep.subr.bf16.mxu0 0
        %1002 = vmatpush1.bf16.msra.mxu0 %v980
        %1003 = vmatprep.subr.bf16.mxu0 0
        %1004 = vmatpush1.bf16.msra.mxu0 %v979
        %1005 = vmatprep.subr.bf16.mxu0 0
        %1006 = vmatpush1.bf16.msra.mxu0 %v978
        %1007 = vmatprep.subr.bf16.mxu0 0
        %1008 = vmatpush1.bf16.msra.mxu0 %v977
        %1009 = vmatprep.subr.bf16.mxu0 0
        %1010 = vmatpush2.bf16.msra.mxu0 0
        %1011 = vmatprep.subr.bf16.mxu0 0
        %1012 = vmatpush2.bf16.msra.mxu0 0
        %1013 = vmatprep.subr.bf16.mxu0 0
        %1014 = vmatpush2.bf16.msra.mxu0 0
        %1015 = vmatprep.subr.bf16.mxu0 0
        %1016 = vmatpush2.bf16.msra.mxu0 0
        %1017 = vmatprep.subr.bf16.mxu0 0
        %1018 = vmatpush2.bf16.msra.mxu0 0
        %1019 = vmatprep.subr.bf16.mxu0 0
        %1020 = vmatpush2.bf16.msra.mxu0 0
        %1021 = vmatprep.subr.bf16.mxu0 0
        %1022 = vmatpush2.bf16.msra.mxu0 0
        %1023 = vmatprep.subr.bf16.mxu0 0
        %1024 = vmatpush2.bf16.msra.mxu0 0
        %1025 = vmatprep.mubr.bf16.mxu0 0
        %1026 = vmatmul.mubr.bf16.gmra.mxu0 %v921
        %v1027 = vpop.f32.mrf.mxu0
        %v1028 = vadd.f32 %v943, %v1027
        %v1029 = vpop.f32.mrf.mxu0
        %v1030 = vpop.f32.mrf.mxu0
        %v1031 = vpop.f32.mrf.mxu0
        %1032 = vdwg.mxu0
        %s1033 = sld [smem:[#allocation18 + $0x1]]
        %s1034 = sld [smem:[#allocation18 + $0x7]]
        %v1035 = vstv %s1034
        %v1036 = vmul.f32 %v1028, %v1035
        %v1037 = vpack.c.bf16 %v1036, %v1036
        %v1038 = vtanh.bf16.pop %v1037
        %p1040 = scmp.ne.f32.partialorder %s1033, %s1033
        %s1041 = sshrl.u32 %s1033, 16
        %s1042 = sand.u32 %s1041, 1
        %s1043 = sadd.s32 32767, %s1042
        %s1044 = sadd.s32 %s1033, %s1043
        %s1045 = sand.u32 %s1044, 4294901760
        %s1046 = scalar_select %p1040, 2143289344, %s1045
        %s1048 = sshrl.u32 %s1046, 16
        %s1049 = sshll.u32 %s1048, 16
        %s1050 = sor.u32 %s1048, %s1049
        %v1051 = vstv %s1050
        %v1053 = vmul.bf16 %v1038, %v1051
        %v1054 = vld [vmem:[%s6] sm:$0xf]
        %v1055 = vld [vmem:[%s6 + $0x4] sm:$0xf]
        %v1056 = vld [vmem:[%s6 + $0x8] sm:$0xf]
        %v1057 = vld [vmem:[%s6 + $0xc] sm:$0xf]
        %v1058 = vld [vmem:[%s6 + $0x10] sm:$0xf]
        %v1059 = vld [vmem:[%s6 + $0x14] sm:$0xf]
        %v1060 = vld [vmem:[%s6 + $0x18] sm:$0xf]
        %v1061 = vld [vmem:[%s6 + $0x1c] sm:$0xf]
        %v1062 = vld [vmem:[%s6 + $0x20] sm:$0xf]
        %v1063 = vld [vmem:[%s6 + $0x24] sm:$0xf]
        %v1064 = vld [vmem:[%s6 + $0x28] sm:$0xf]
        %v1065 = vld [vmem:[%s6 + $0x2c] sm:$0xf]
        %v1066 = vld [vmem:[%s6 + $0x30] sm:$0xf]
        %v1067 = vld [vmem:[%s6 + $0x34] sm:$0xf]
        %v1068 = vld [vmem:[%s6 + $0x38] sm:$0xf]
        %v1069 = vld [vmem:[%s6 + $0x3c] sm:$0xf]
        %v1070 = vld [vmem:[#allocation6] sm:$0x1]
        %v1072 = vlaneseq
        %v1073 = vshrl.u32 %v1072, 7
        %v1074 = vsub.s32 0, %v1073
        %v1075 = vrot.slane %v1070, %v1074
        %v1093 = vunpack.c.l.b16 %v1054
        %v1094 = vunpack.c.l.b16 %v1055
        %v1095 = vunpack.c.l.b16 %v1056
        %v1096 = vunpack.c.l.b16 %v1057
        %v1097 = vunpack.c.l.b16 %v1058
        %v1098 = vunpack.c.l.b16 %v1059
        %v1099 = vunpack.c.l.b16 %v1060
        %v1100 = vunpack.c.l.b16 %v1061
        %v1101 = vunpack.c.l.b16 %v1062
        %v1102 = vunpack.c.l.b16 %v1063
        %v1103 = vunpack.c.l.b16 %v1064
        %v1104 = vunpack.c.l.b16 %v1065
        %v1105 = vunpack.c.l.b16 %v1066
        %v1106 = vunpack.c.l.b16 %v1067
        %v1107 = vunpack.c.l.b16 %v1068
        %v1108 = vunpack.c.l.b16 %v1069
        %v1109 = vpack.c.b16 %v1094, %v1093
        %v1110 = vpack.c.b16 %v1096, %v1095
        %v1111 = vpack.c.b16 %v1098, %v1097
        %v1112 = vpack.c.b16 %v1100, %v1099
        %v1113 = vpack.c.b16 %v1102, %v1101
        %v1114 = vpack.c.b16 %v1104, %v1103
        %v1115 = vpack.c.b16 %v1106, %v1105
        %v1116 = vpack.c.b16 %v1108, %v1107
        %1125 = vmatprep.subr.bf16.mxu0 0
        %1126 = vmatpush1.bf16.msra.mxu0 %v1116
        %1127 = vmatprep.subr.bf16.mxu0 0
        %1128 = vmatpush1.bf16.msra.mxu0 %v1115
        %1129 = vmatprep.subr.bf16.mxu0 0
        %1130 = vmatpush1.bf16.msra.mxu0 %v1114
        %1131 = vmatprep.subr.bf16.mxu0 0
        %1132 = vmatpush1.bf16.msra.mxu0 %v1113
        %1133 = vmatprep.subr.bf16.mxu0 0
        %1134 = vmatpush1.bf16.msra.mxu0 %v1112
        %1135 = vmatprep.subr.bf16.mxu0 0
        %1136 = vmatpush1.bf16.msra.mxu0 %v1111
        %1137 = vmatprep.subr.bf16.mxu0 0
        %1138 = vmatpush1.bf16.msra.mxu0 %v1110
        %1139 = vmatprep.subr.bf16.mxu0 0
        %1140 = vmatpush1.bf16.msra.mxu0 %v1109
        %1141 = vmatprep.subr.bf16.mxu0 0
        %1142 = vmatpush2.bf16.msra.mxu0 0
        %1143 = vmatprep.subr.bf16.mxu0 0
        %1144 = vmatpush2.bf16.msra.mxu0 0
        %1145 = vmatprep.subr.bf16.mxu0 0
        %1146 = vmatpush2.bf16.msra.mxu0 0
        %1147 = vmatprep.subr.bf16.mxu0 0
        %1148 = vmatpush2.bf16.msra.mxu0 0
        %1149 = vmatprep.subr.bf16.mxu0 0
        %1150 = vmatpush2.bf16.msra.mxu0 0
        %1151 = vmatprep.subr.bf16.mxu0 0
        %1152 = vmatpush2.bf16.msra.mxu0 0
        %1153 = vmatprep.subr.bf16.mxu0 0
        %1154 = vmatpush2.bf16.msra.mxu0 0
        %1155 = vmatprep.subr.bf16.mxu0 0
        %1156 = vmatpush2.bf16.msra.mxu0 0
        %1157 = vmatprep.mubr.bf16.mxu0 0
        %1158 = vmatmul.mubr.bf16.gmra.mxu0 %v1053
        %v1159 = vpop.f32.mrf.mxu0
        %v1160 = vadd.f32 %v1075, %v1159
        %v1161 = vpop.f32.mrf.mxu0
        %v1162 = vpop.f32.mrf.mxu0
        %v1163 = vpop.f32.mrf.mxu0
        %1164 = vdwg.mxu0
        %v1165 = vmul.f32 %v1160, 0.5
        %v1166 = vmul.f32 %v1165, 1.442695
        %v1167 = vpow.pop %v1166
        %v1168 = vld [vmem:[%s827] sm:$0xff]
        %1170 = vrot.lane.b32.xlu0 %v1167, 120
        %v1171 = vpop.permute.xlu0 %1170
        %v1173 = vmul.f32 %v1168, %v1171
        %v1174 = vadd.f32 %v1160, %v1173
        %v1175 = vpack.c.bf16 %v1174, %v1174
        %v1176 = vld [vmem:[#allocation8] sm:$0xf]
        %v1177 = vld [vmem:[#allocation9] sm:$0x1]
        %v1179 = vlaneseq
        %v1180 = vshrl.u32 %v1179, 7
        %v1181 = vsub.s32 0, %v1180
        %v1182 = vrot.slane %v1177, %v1181
        %vm1184 = vcmask 64512
        %v1186 = vsel %vm1184, %v1175, 0
        %vm1188 = vcmask 1043456
        %v1190 = vsel %vm1188, %v1176, 0
        %1192 = vmatprep.subr.bf16.mxu0 0
        %1193 = vmatpush1.bf16.msra.mxu0 0
        %1194 = vmatprep.subr.bf16.mxu0 0
        %1195 = vmatpush1.bf16.msra.mxu0 0
        %1196 = vmatprep.subr.bf16.mxu0 0
        %1197 = vmatpush1.bf16.msra.mxu0 0
        %1198 = vmatprep.subr.bf16.mxu0 0
        %1199 = vmatpush1.bf16.msra.mxu0 0
        %1200 = vmatprep.subr.bf16.mxu0 0
        %1201 = vmatpush1.bf16.msra.mxu0 0
        %1202 = vmatprep.subr.bf16.mxu0 0
        %1203 = vmatpush1.bf16.msra.mxu0 0
        %1204 = vmatprep.subr.bf16.mxu0 0
        %1205 = vmatpush1.bf16.msra.mxu0 0
        %1206 = vmatprep.subr.bf16.mxu0 0
        %1207 = vmatpush1.bf16.msra.mxu0 %v1190
        %1208 = vmatprep.subr.bf16.mxu0 0
        %1209 = vmatpush2.bf16.msra.mxu0 0
        %1210 = vmatprep.subr.bf16.mxu0 0
        %1211 = vmatpush2.bf16.msra.mxu0 0
        %1212 = vmatprep.subr.bf16.mxu0 0
        %1213 = vmatpush2.bf16.msra.mxu0 0
        %1214 = vmatprep.subr.bf16.mxu0 0
        %1215 = vmatpush2.bf16.msra.mxu0 0
        %1216 = vmatprep.subr.bf16.mxu0 0
        %1217 = vmatpush2.bf16.msra.mxu0 0
        %1218 = vmatprep.subr.bf16.mxu0 0
        %1219 = vmatpush2.bf16.msra.mxu0 0
        %1220 = vmatprep.subr.bf16.mxu0 0
        %1221 = vmatpush2.bf16.msra.mxu0 0
        %1222 = vmatprep.subr.bf16.mxu0 0
        %1223 = vmatpush2.bf16.msra.mxu0 0
        %1224 = vmatprep.mubr.bf16.mxu0 0
        %1225 = vmatmul.mubr.bf16.gmra.mxu0 %v1186
        %v1226 = vpop.f32.mrf.mxu0
        %v1227 = vadd.f32 %v1182, %v1226
        %v1228 = vpop.f32.mrf.mxu0
        %v1229 = vpop.f32.mrf.mxu0
        %v1230 = vpop.f32.mrf.mxu0
        %1231 = vdwg.mxu0
        %s1232 = sld [smem:[#allocation18 + $0x2]]
        %s1233 = sld [smem:[#allocation18 + $0x8]]
        %v1234 = vstv %s1233
        %v1235 = vmul.f32 %v1227, %v1234
        %v1236 = vpack.c.bf16 %v1235, %v1235
        %v1237 = vtanh.bf16.pop %v1236
        %p1239 = scmp.ne.f32.partialorder %s1232, %s1232
        %s1240 = sshrl.u32 %s1232, 16
        %s1241 = sand.u32 %s1240, 1
        %s1242 = sadd.s32 32767, %s1241
        %s1243 = sadd.s32 %s1232, %s1242
        %s1244 = sand.u32 %s1243, 4294901760
        %s1245 = scalar_select %p1239, 2143289344, %s1244
        %s1247 = sshrl.u32 %s1245, 16
        %s1248 = sshll.u32 %s1247, 16
        %s1249 = sor.u32 %s1247, %s1248
        %v1250 = vstv %s1249
        %v1252 = vmul.bf16 %v1237, %v1250
        %v1253 = vld [vmem:[%s10] sm:$0xf]
        %v1254 = vld [vmem:[%s10 + $0x4] sm:$0xf]
        %v1255 = vld [vmem:[%s10 + $0x8] sm:$0xf]
        %v1256 = vld [vmem:[%s10 + $0xc] sm:$0xf]
        %v1257 = vld [vmem:[%s10 + $0x10] sm:$0xf]
        %v1258 = vld [vmem:[%s10 + $0x14] sm:$0xf]
        %v1259 = vld [vmem:[%s10 + $0x18] sm:$0xf]
        %v1260 = vld [vmem:[%s10 + $0x1c] sm:$0xf]
        %v1261 = vld [vmem:[%s10 + $0x20] sm:$0xf]
        %v1262 = vld [vmem:[%s10 + $0x24] sm:$0xf]
        %v1263 = vld [vmem:[%s10 + $0x28] sm:$0xf]
        %v1264 = vld [vmem:[%s10 + $0x2c] sm:$0xf]
        %v1265 = vld [vmem:[%s10 + $0x30] sm:$0xf]
        %v1266 = vld [vmem:[%s10 + $0x34] sm:$0xf]
        %v1267 = vld [vmem:[%s10 + $0x38] sm:$0xf]
        %v1268 = vld [vmem:[%s10 + $0x3c] sm:$0xf]
        %v1269 = vld [vmem:[#allocation11] sm:$0x1]
        %v1271 = vlaneseq
        %v1272 = vshrl.u32 %v1271, 7
        %v1273 = vsub.s32 0, %v1272
        %v1274 = vrot.slane %v1269, %v1273
        %v1292 = vunpack.c.l.b16 %v1253
        %v1293 = vunpack.c.l.b16 %v1254
        %v1294 = vunpack.c.l.b16 %v1255
        %v1295 = vunpack.c.l.b16 %v1256
        %v1296 = vunpack.c.l.b16 %v1257
        %v1297 = vunpack.c.l.b16 %v1258
        %v1298 = vunpack.c.l.b16 %v1259
        %v1299 = vunpack.c.l.b16 %v1260
        %v1300 = vunpack.c.l.b16 %v1261
        %v1301 = vunpack.c.l.b16 %v1262
        %v1302 = vunpack.c.l.b16 %v1263
        %v1303 = vunpack.c.l.b16 %v1264
        %v1304 = vunpack.c.l.b16 %v1265
        %v1305 = vunpack.c.l.b16 %v1266
        %v1306 = vunpack.c.l.b16 %v1267
        %v1307 = vunpack.c.l.b16 %v1268
        %v1308 = vpack.c.b16 %v1293, %v1292
        %v1309 = vpack.c.b16 %v1295, %v1294
        %v1310 = vpack.c.b16 %v1297, %v1296
        %v1311 = vpack.c.b16 %v1299, %v1298
        %v1312 = vpack.c.b16 %v1301, %v1300
        %v1313 = vpack.c.b16 %v1303, %v1302
        %v1314 = vpack.c.b16 %v1305, %v1304
        %v1315 = vpack.c.b16 %v1307, %v1306
        %1324 = vmatprep.subr.bf16.mxu0 0
        %1325 = vmatpush1.bf16.msra.mxu0 %v1315
        %1326 = vmatprep.subr.bf16.mxu0 0
        %1327 = vmatpush1.bf16.msra.mxu0 %v1314
        %1328 = vmatprep.subr.bf16.mxu0 0
        %1329 = vmatpush1.bf16.msra.mxu0 %v1313
        %1330 = vmatprep.subr.bf16.mxu0 0
        %1331 = vmatpush1.bf16.msra.mxu0 %v1312
        %1332 = vmatprep.subr.bf16.mxu0 0
        %1333 = vmatpush1.bf16.msra.mxu0 %v1311
        %1334 = vmatprep.subr.bf16.mxu0 0
        %1335 = vmatpush1.bf16.msra.mxu0 %v1310
        %1336 = vmatprep.subr.bf16.mxu0 0
        %1337 = vmatpush1.bf16.msra.mxu0 %v1309
        %1338 = vmatprep.subr.bf16.mxu0 0
        %1339 = vmatpush1.bf16.msra.mxu0 %v1308
        %1340 = vmatprep.subr.bf16.mxu0 0
        %1341 = vmatpush2.bf16.msra.mxu0 0
        %1342 = vmatprep.subr.bf16.mxu0 0
        %1343 = vmatpush2.bf16.msra.mxu0 0
        %1344 = vmatprep.subr.bf16.mxu0 0
        %1345 = vmatpush2.bf16.msra.mxu0 0
        %1346 = vmatprep.subr.bf16.mxu0 0
        %1347 = vmatpush2.bf16.msra.mxu0 0
        %1348 = vmatprep.subr.bf16.mxu0 0
        %1349 = vmatpush2.bf16.msra.mxu0 0
        %1350 = vmatprep.subr.bf16.mxu0 0
        %1351 = vmatpush2.bf16.msra.mxu0 0
        %1352 = vmatprep.subr.bf16.mxu0 0
        %1353 = vmatpush2.bf16.msra.mxu0 0
        %1354 = vmatprep.subr.bf16.mxu0 0
        %1355 = vmatpush2.bf16.msra.mxu0 0
        %1356 = vmatprep.mubr.bf16.mxu0 0
        %1357 = vmatmul.mubr.bf16.gmra.mxu0 %v1252
        %v1358 = vpop.f32.mrf.mxu0
        %v1359 = vadd.f32 %v1274, %v1358
        %v1360 = vpop.f32.mrf.mxu0
        %v1361 = vpop.f32.mrf.mxu0
        %v1362 = vpop.f32.mrf.mxu0
        %1363 = vdwg.mxu0
        %s1364 = sld [smem:[#allocation18 + $0x3]]
        %s1365 = sld [smem:[#allocation18 + $0x9]]
        %v1366 = vstv %s1365
        %v1367 = vmul.f32 %v1359, %v1366
        %v1368 = vpack.c.bf16 %v1367, %v1367
        %v1369 = vtanh.bf16.pop %v1368
        %p1371 = scmp.ne.f32.partialorder %s1364, %s1364
        %s1372 = sshrl.u32 %s1364, 16
        %s1373 = sand.u32 %s1372, 1
        %s1374 = sadd.s32 32767, %s1373
        %s1375 = sadd.s32 %s1364, %s1374
        %s1376 = sand.u32 %s1375, 4294901760
        %s1377 = scalar_select %p1371, 2143289344, %s1376
        %s1379 = sshrl.u32 %s1377, 16
        %s1380 = sshll.u32 %s1379, 16
        %s1381 = sor.u32 %s1379, %s1380
        %v1382 = vstv %s1381
        %v1384 = vmul.bf16 %v1369, %v1382
        %v1385 = vld [vmem:[%s12] sm:$0xf]
        %v1386 = vld [vmem:[%s12 + $0x4] sm:$0xf]
        %v1387 = vld [vmem:[%s12 + $0x8] sm:$0xf]
        %v1388 = vld [vmem:[%s12 + $0xc] sm:$0xf]
        %v1389 = vld [vmem:[%s12 + $0x10] sm:$0xf]
        %v1390 = vld [vmem:[%s12 + $0x14] sm:$0xf]
        %v1391 = vld [vmem:[%s12 + $0x18] sm:$0xf]
        %v1392 = vld [vmem:[%s12 + $0x1c] sm:$0xf]
        %v1393 = vld [vmem:[%s12 + $0x20] sm:$0xf]
        %v1394 = vld [vmem:[%s12 + $0x24] sm:$0xf]
        %v1395 = vld [vmem:[%s12 + $0x28] sm:$0xf]
        %v1396 = vld [vmem:[%s12 + $0x2c] sm:$0xf]
        %v1397 = vld [vmem:[%s12 + $0x30] sm:$0xf]
        %v1398 = vld [vmem:[%s12 + $0x34] sm:$0xf]
        %v1399 = vld [vmem:[%s12 + $0x38] sm:$0xf]
        %v1400 = vld [vmem:[%s12 + $0x3c] sm:$0xf]
        %v1401 = vld [vmem:[#allocation12] sm:$0x1]
        %v1403 = vlaneseq
        %v1404 = vshrl.u32 %v1403, 7
        %v1405 = vsub.s32 0, %v1404
        %v1406 = vrot.slane %v1401, %v1405
        %v1424 = vunpack.c.l.b16 %v1385
        %v1425 = vunpack.c.l.b16 %v1386
        %v1426 = vunpack.c.l.b16 %v1387
        %v1427 = vunpack.c.l.b16 %v1388
        %v1428 = vunpack.c.l.b16 %v1389
        %v1429 = vunpack.c.l.b16 %v1390
        %v1430 = vunpack.c.l.b16 %v1391
        %v1431 = vunpack.c.l.b16 %v1392
        %v1432 = vunpack.c.l.b16 %v1393
        %v1433 = vunpack.c.l.b16 %v1394
        %v1434 = vunpack.c.l.b16 %v1395
        %v1435 = vunpack.c.l.b16 %v1396
        %v1436 = vunpack.c.l.b16 %v1397
        %v1437 = vunpack.c.l.b16 %v1398
        %v1438 = vunpack.c.l.b16 %v1399
        %v1439 = vunpack.c.l.b16 %v1400
        %v1440 = vpack.c.b16 %v1425, %v1424
        %v1441 = vpack.c.b16 %v1427, %v1426
        %v1442 = vpack.c.b16 %v1429, %v1428
        %v1443 = vpack.c.b16 %v1431, %v1430
        %v1444 = vpack.c.b16 %v1433, %v1432
        %v1445 = vpack.c.b16 %v1435, %v1434
        %v1446 = vpack.c.b16 %v1437, %v1436
        %v1447 = vpack.c.b16 %v1439, %v1438
        %1456 = vmatprep.subr.bf16.mxu0 0
        %1457 = vmatpush1.bf16.msra.mxu0 %v1447
        %1458 = vmatprep.subr.bf16.mxu0 0
        %1459 = vmatpush1.bf16.msra.mxu0 %v1446
        %1460 = vmatprep.subr.bf16.mxu0 0
        %1461 = vmatpush1.bf16.msra.mxu0 %v1445
        %1462 = vmatprep.subr.bf16.mxu0 0
        %1463 = vmatpush1.bf16.msra.mxu0 %v1444
        %1464 = vmatprep.subr.bf16.mxu0 0
        %1465 = vmatpush1.bf16.msra.mxu0 %v1443
        %1466 = vmatprep.subr.bf16.mxu0 0
        %1467 = vmatpush1.bf16.msra.mxu0 %v1442
        %1468 = vmatprep.subr.bf16.mxu0 0
        %1469 = vmatpush1.bf16.msra.mxu0 %v1441
        %1470 = vmatprep.subr.bf16.mxu0 0
        %1471 = vmatpush1.bf16.msra.mxu0 %v1440
        %1472 = vmatprep.subr.bf16.mxu0 0
        %1473 = vmatpush2.bf16.msra.mxu0 0
        %1474 = vmatprep.subr.bf16.mxu0 0
        %1475 = vmatpush2.bf16.msra.mxu0 0
        %1476 = vmatprep.subr.bf16.mxu0 0
        %1477 = vmatpush2.bf16.msra.mxu0 0
        %1478 = vmatprep.subr.bf16.mxu0 0
        %1479 = vmatpush2.bf16.msra.mxu0 0
        %1480 = vmatprep.subr.bf16.mxu0 0
        %1481 = vmatpush2.bf16.msra.mxu0 0
        %1482 = vmatprep.subr.bf16.mxu0 0
        %1483 = vmatpush2.bf16.msra.mxu0 0
        %1484 = vmatprep.subr.bf16.mxu0 0
        %1485 = vmatpush2.bf16.msra.mxu0 0
        %1486 = vmatprep.subr.bf16.mxu0 0
        %1487 = vmatpush2.bf16.msra.mxu0 0
        %1488 = vmatprep.mubr.bf16.mxu0 0
        %1489 = vmatmul.mubr.bf16.gmra.mxu0 %v1384
        %v1490 = vpop.f32.mrf.mxu0
        %v1491 = vadd.f32 %v1406, %v1490
        %v1492 = vpop.f32.mrf.mxu0
        %v1493 = vpop.f32.mrf.mxu0
        %v1494 = vpop.f32.mrf.mxu0
        %1495 = vdwg.mxu0
        %1496 = vst.msk [vmem:[%s813] sm:$0xff] %vm857, %v1491
        %v1497 = vlaneseq
        %v1498 = vshrl.u32 %v1497, 7
        %s1499 = smul.u32 %s43, 8
        %v1500 = vstv %s1499
        %v1501 = vadd.s32 %v1498, %v1500
        %vm1502 = vcmp.lt.s32.totalorder %v1501, 16
        %v1503 = vsel %vm1502, 1, 0
        %v1504 = vcvt.s32.f32 %v1503
        %v1505 = vadd.f32 %v1160, 1.0
        %v1506 = vmul.f32 %v1160, %v1160
        %1508 = vrot.lane.b32.xlu0 %v1506, 8
        %v1509 = vpop.permute.xlu0 %1508
        %v1511 = vsub.f32 %v1505, %v1509
        %v1512 = vmul.f32 %v1167, %v1167
        %v1513 = vsub.f32 %v1511, %v1512
        %1515 = vrot.lane.b32.xlu0 %v1513, 120
        %v1516 = vpop.permute.xlu0 %1515
        %v1518 = vsel %vm1184, %v1516, 0.0
        %1519 = vadd.xlane.f32.xlu0 %v1518
        %v1520 = vpop.xlane.xlu0 %1519
        %v1521 = vmul.f32 %v1520, -0.5
        %v1522 = vmul.f32 %v1521, %v1504
        %vm1523 = vcmask 7168
        %v1524 = vsel %vm1523, %v1522, 0.0
        %1525 = vadd.xlane.f32.xlu0 %v1524
        %v1526 = vpop.xlane.xlu0 %1525
        %v1527 = vrot.slane %v1526, 4
        %v1528 = vadd.f32 %v1526, %v1527
        %v1529 = vrot.slane %v1528, 2
        %v1530 = vadd.f32 %v1528, %v1529
        %v1531 = vrot.slane %v1530, 1
        %v1532 = vadd.f32 %v1530, %v1531
        %s1533 = vtos %v1532
        %v1534 = vpack.c.bf16 %v1491, %v1491
        %v1535 = vld [vmem:[%s14] sm:$0xf]
        %v1536 = vld [vmem:[%s14 + $0x4] sm:$0xf]
        %v1537 = vld [vmem:[%s14 + $0x8] sm:$0xf]
        %v1538 = vld [vmem:[%s14 + $0xc] sm:$0xf]
        %v1539 = vld [vmem:[#allocation14] sm:$0x1]
        %v1541 = vlaneseq
        %v1542 = vshrl.u32 %v1541, 7
        %v1543 = vsub.s32 0, %v1542
        %v1544 = vrot.slane %v1539, %v1543
        %v1550 = vunpack.c.l.b16 %v1535
        %v1551 = vunpack.c.l.b16 %v1536
        %v1552 = vunpack.c.l.b16 %v1537
        %v1553 = vunpack.c.l.b16 %v1538
        %v1554 = vpack.c.b16 %v1551, %v1550
        %v1555 = vpack.c.b16 %v1553, %v1552
        %v1559 = vsel %vm857, %v1534, 0
        %1561 = vmatprep.subr.bf16.mxu0 0
        %1562 = vmatpush1.bf16.msra.mxu0 0
        %1563 = vmatprep.subr.bf16.mxu0 0
        %1564 = vmatpush1.bf16.msra.mxu0 0
        %1565 = vmatprep.subr.bf16.mxu0 0
        %1566 = vmatpush1.bf16.msra.mxu0 0
        %1567 = vmatprep.subr.bf16.mxu0 0
        %1568 = vmatpush1.bf16.msra.mxu0 0
        %1569 = vmatprep.subr.bf16.mxu0 0
        %1570 = vmatpush1.bf16.msra.mxu0 0
        %1571 = vmatprep.subr.bf16.mxu0 0
        %1572 = vmatpush1.bf16.msra.mxu0 0
        %1573 = vmatprep.subr.bf16.mxu0 0
        %1574 = vmatpush1.bf16.msra.mxu0 %v1555
        %1575 = vmatprep.subr.bf16.mxu0 0
        %1576 = vmatpush1.bf16.msra.mxu0 %v1554
        %1577 = vmatprep.subr.bf16.mxu0 0
        %1578 = vmatpush2.bf16.msra.mxu0 0
        %1579 = vmatprep.subr.bf16.mxu0 0
        %1580 = vmatpush2.bf16.msra.mxu0 0
        %1581 = vmatprep.subr.bf16.mxu0 0
        %1582 = vmatpush2.bf16.msra.mxu0 0
        %1583 = vmatprep.subr.bf16.mxu0 0
        %1584 = vmatpush2.bf16.msra.mxu0 0
        %1585 = vmatprep.subr.bf16.mxu0 0
        %1586 = vmatpush2.bf16.msra.mxu0 0
        %1587 = vmatprep.subr.bf16.mxu0 0
        %1588 = vmatpush2.bf16.msra.mxu0 0
        %1589 = vmatprep.subr.bf16.mxu0 0
        %1590 = vmatpush2.bf16.msra.mxu0 0
        %1591 = vmatprep.subr.bf16.mxu0 0
        %1592 = vmatpush2.bf16.msra.mxu0 0
        %1593 = vmatprep.mubr.bf16.mxu0 0
        %1594 = vmatmul.mubr.bf16.gmra.mxu0 %v1559
        %v1595 = vpop.f32.mrf.mxu0
        %v1596 = vadd.f32 %v1544, %v1595
        %v1597 = vpop.f32.mrf.mxu0
        %v1598 = vpop.f32.mrf.mxu0
        %v1599 = vpop.f32.mrf.mxu0
        %1600 = vdwg.mxu0
        %s1601 = sld [smem:[#allocation18 + $0x4]]
        %s1602 = sld [smem:[#allocation18 + $0xa]]
        %v1603 = vstv %s1602
        %v1604 = vmul.f32 %v1596, %v1603
        %v1605 = vpack.c.bf16 %v1604, %v1604
        %v1606 = vtanh.bf16.pop %v1605
        %p1608 = scmp.ne.f32.partialorder %s1601, %s1601
        %s1609 = sshrl.u32 %s1601, 16
        %s1610 = sand.u32 %s1609, 1
        %s1611 = sadd.s32 32767, %s1610
        %s1612 = sadd.s32 %s1601, %s1611
        %s1613 = sand.u32 %s1612, 4294901760
        %s1614 = scalar_select %p1608, 2143289344, %s1613
        %s1616 = sshrl.u32 %s1614, 16
        %s1617 = sshll.u32 %s1616, 16
        %s1618 = sor.u32 %s1616, %s1617
        %v1619 = vstv %s1618
        %v1621 = vmul.bf16 %v1606, %v1619
        %v1622 = vld [vmem:[%s16] sm:$0xf]
        %v1623 = vld [vmem:[%s16 + $0x4] sm:$0xf]
        %v1624 = vld [vmem:[%s16 + $0x8] sm:$0xf]
        %v1625 = vld [vmem:[%s16 + $0xc] sm:$0xf]
        %v1626 = vld [vmem:[%s16 + $0x10] sm:$0xf]
        %v1627 = vld [vmem:[%s16 + $0x14] sm:$0xf]
        %v1628 = vld [vmem:[%s16 + $0x18] sm:$0xf]
        %v1629 = vld [vmem:[%s16 + $0x1c] sm:$0xf]
        %v1630 = vld [vmem:[%s16 + $0x20] sm:$0xf]
        %v1631 = vld [vmem:[%s16 + $0x24] sm:$0xf]
        %v1632 = vld [vmem:[%s16 + $0x28] sm:$0xf]
        %v1633 = vld [vmem:[%s16 + $0x2c] sm:$0xf]
        %v1634 = vld [vmem:[%s16 + $0x30] sm:$0xf]
        %v1635 = vld [vmem:[%s16 + $0x34] sm:$0xf]
        %v1636 = vld [vmem:[%s16 + $0x38] sm:$0xf]
        %v1637 = vld [vmem:[%s16 + $0x3c] sm:$0xf]
        %v1638 = vld [vmem:[#allocation15] sm:$0x1]
        %v1640 = vlaneseq
        %v1641 = vshrl.u32 %v1640, 7
        %v1642 = vsub.s32 0, %v1641
        %v1643 = vrot.slane %v1638, %v1642
        %v1661 = vunpack.c.l.b16 %v1622
        %v1662 = vunpack.c.l.b16 %v1623
        %v1663 = vunpack.c.l.b16 %v1624
        %v1664 = vunpack.c.l.b16 %v1625
        %v1665 = vunpack.c.l.b16 %v1626
        %v1666 = vunpack.c.l.b16 %v1627
        %v1667 = vunpack.c.l.b16 %v1628
        %v1668 = vunpack.c.l.b16 %v1629
        %v1669 = vunpack.c.l.b16 %v1630
        %v1670 = vunpack.c.l.b16 %v1631
        %v1671 = vunpack.c.l.b16 %v1632
        %v1672 = vunpack.c.l.b16 %v1633
        %v1673 = vunpack.c.l.b16 %v1634
        %v1674 = vunpack.c.l.b16 %v1635
        %v1675 = vunpack.c.l.b16 %v1636
        %v1676 = vunpack.c.l.b16 %v1637
        %v1677 = vpack.c.b16 %v1662, %v1661
        %v1678 = vpack.c.b16 %v1664, %v1663
        %v1679 = vpack.c.b16 %v1666, %v1665
        %v1680 = vpack.c.b16 %v1668, %v1667
        %v1681 = vpack.c.b16 %v1670, %v1669
        %v1682 = vpack.c.b16 %v1672, %v1671
        %v1683 = vpack.c.b16 %v1674, %v1673
        %v1684 = vpack.c.b16 %v1676, %v1675
        %1693 = vmatprep.subr.bf16.mxu0 0
        %1694 = vmatpush1.bf16.msra.mxu0 %v1684
        %1695 = vmatprep.subr.bf16.mxu0 0
        %1696 = vmatpush1.bf16.msra.mxu0 %v1683
        %1697 = vmatprep.subr.bf16.mxu0 0
        %1698 = vmatpush1.bf16.msra.mxu0 %v1682
        %1699 = vmatprep.subr.bf16.mxu0 0
        %1700 = vmatpush1.bf16.msra.mxu0 %v1681
        %1701 = vmatprep.subr.bf16.mxu0 0
        %1702 = vmatpush1.bf16.msra.mxu0 %v1680
        %1703 = vmatprep.subr.bf16.mxu0 0
        %1704 = vmatpush1.bf16.msra.mxu0 %v1679
        %1705 = vmatprep.subr.bf16.mxu0 0
        %1706 = vmatpush1.bf16.msra.mxu0 %v1678
        %1707 = vmatprep.subr.bf16.mxu0 0
        %1708 = vmatpush1.bf16.msra.mxu0 %v1677
        %1709 = vmatprep.subr.bf16.mxu0 0
        %1710 = vmatpush2.bf16.msra.mxu0 0
        %1711 = vmatprep.subr.bf16.mxu0 0
        %1712 = vmatpush2.bf16.msra.mxu0 0
        %1713 = vmatprep.subr.bf16.mxu0 0
        %1714 = vmatpush2.bf16.msra.mxu0 0
        %1715 = vmatprep.subr.bf16.mxu0 0
        %1716 = vmatpush2.bf16.msra.mxu0 0
        %1717 = vmatprep.subr.bf16.mxu0 0
        %1718 = vmatpush2.bf16.msra.mxu0 0
        %1719 = vmatprep.subr.bf16.mxu0 0
        %1720 = vmatpush2.bf16.msra.mxu0 0
        %1721 = vmatprep.subr.bf16.mxu0 0
        %1722 = vmatpush2.bf16.msra.mxu0 0
        %1723 = vmatprep.subr.bf16.mxu0 0
        %1724 = vmatpush2.bf16.msra.mxu0 0
        %1725 = vmatprep.mubr.bf16.mxu0 0
        %1726 = vmatmul.mubr.bf16.gmra.mxu0 %v1621
        %v1727 = vpop.f32.mrf.mxu0
        %v1728 = vadd.f32 %v1643, %v1727
        %v1729 = vpop.f32.mrf.mxu0
        %v1730 = vpop.f32.mrf.mxu0
        %v1731 = vpop.f32.mrf.mxu0
        %1732 = vdwg.mxu0
        %s1733 = sld [smem:[#allocation18 + $0x5]]
        %s1734 = sld [smem:[#allocation18 + $0xb]]
        %v1735 = vstv %s1734
        %v1736 = vmul.f32 %v1728, %v1735
        %v1737 = vpack.c.bf16 %v1736, %v1736
        %v1738 = vtanh.bf16.pop %v1737
        %p1740 = scmp.ne.f32.partialorder %s1733, %s1733
        %s1741 = sshrl.u32 %s1733, 16
        %s1742 = sand.u32 %s1741, 1
        %s1743 = sadd.s32 32767, %s1742
        %s1744 = sadd.s32 %s1733, %s1743
        %s1745 = sand.u32 %s1744, 4294901760
        %s1746 = scalar_select %p1740, 2143289344, %s1745
        %s1748 = sshrl.u32 %s1746, 16
        %s1749 = sshll.u32 %s1748, 16
        %s1750 = sor.u32 %s1748, %s1749
        %v1751 = vstv %s1750
        %v1753 = vmul.bf16 %v1738, %v1751
        %v1754 = vld [vmem:[%s18] sm:$0xf]
        %v1755 = vld [vmem:[%s18 + $0x4] sm:$0xf]
        %v1756 = vld [vmem:[%s18 + $0x8] sm:$0xf]
        %v1757 = vld [vmem:[%s18 + $0xc] sm:$0xf]
        %v1758 = vld [vmem:[%s18 + $0x10] sm:$0xf]
        %v1759 = vld [vmem:[%s18 + $0x14] sm:$0xf]
        %v1760 = vld [vmem:[%s18 + $0x18] sm:$0xf]
        %v1761 = vld [vmem:[%s18 + $0x1c] sm:$0xf]
        %v1762 = vld [vmem:[%s18 + $0x20] sm:$0xf]
        %v1763 = vld [vmem:[%s18 + $0x24] sm:$0xf]
        %v1764 = vld [vmem:[%s18 + $0x28] sm:$0xf]
        %v1765 = vld [vmem:[%s18 + $0x2c] sm:$0xf]
        %v1766 = vld [vmem:[%s18 + $0x30] sm:$0xf]
        %v1767 = vld [vmem:[%s18 + $0x34] sm:$0xf]
        %v1768 = vld [vmem:[%s18 + $0x38] sm:$0xf]
        %v1769 = vld [vmem:[%s18 + $0x3c] sm:$0xf]
        %v1770 = vld [vmem:[#allocation17] sm:$0x1]
        %v1772 = vlaneseq
        %v1773 = vshrl.u32 %v1772, 7
        %v1774 = vsub.s32 0, %v1773
        %v1775 = vrot.slane %v1770, %v1774
        %v1793 = vunpack.c.l.b16 %v1754
        %v1794 = vunpack.c.l.b16 %v1755
        %v1795 = vunpack.c.l.b16 %v1756
        %v1796 = vunpack.c.l.b16 %v1757
        %v1797 = vunpack.c.l.b16 %v1758
        %v1798 = vunpack.c.l.b16 %v1759
        %v1799 = vunpack.c.l.b16 %v1760
        %v1800 = vunpack.c.l.b16 %v1761
        %v1801 = vunpack.c.l.b16 %v1762
        %v1802 = vunpack.c.l.b16 %v1763
        %v1803 = vunpack.c.l.b16 %v1764
        %v1804 = vunpack.c.l.b16 %v1765
        %v1805 = vunpack.c.l.b16 %v1766
        %v1806 = vunpack.c.l.b16 %v1767
        %v1807 = vunpack.c.l.b16 %v1768
        %v1808 = vunpack.c.l.b16 %v1769
        %v1809 = vpack.c.b16 %v1794, %v1793
        %v1810 = vpack.c.b16 %v1796, %v1795
        %v1811 = vpack.c.b16 %v1798, %v1797
        %v1812 = vpack.c.b16 %v1800, %v1799
        %v1813 = vpack.c.b16 %v1802, %v1801
        %v1814 = vpack.c.b16 %v1804, %v1803
        %v1815 = vpack.c.b16 %v1806, %v1805
        %v1816 = vpack.c.b16 %v1808, %v1807
        %1825 = vmatprep.subr.bf16.mxu0 0
        %1826 = vmatpush1.bf16.msra.mxu0 %v1816
        %1827 = vmatprep.subr.bf16.mxu0 0
        %1828 = vmatpush1.bf16.msra.mxu0 %v1815
        %1829 = vmatprep.subr.bf16.mxu0 0
        %1830 = vmatpush1.bf16.msra.mxu0 %v1814
        %1831 = vmatprep.subr.bf16.mxu0 0
        %1832 = vmatpush1.bf16.msra.mxu0 %v1813
        %1833 = vmatprep.subr.bf16.mxu0 0
        %1834 = vmatpush1.bf16.msra.mxu0 %v1812
        %1835 = vmatprep.subr.bf16.mxu0 0
        %1836 = vmatpush1.bf16.msra.mxu0 %v1811
        %1837 = vmatprep.subr.bf16.mxu0 0
        %1838 = vmatpush1.bf16.msra.mxu0 %v1810
        %1839 = vmatprep.subr.bf16.mxu0 0
        %1840 = vmatpush1.bf16.msra.mxu0 %v1809
        %1841 = vmatprep.subr.bf16.mxu0 0
        %1842 = vmatpush2.bf16.msra.mxu0 0
        %1843 = vmatprep.subr.bf16.mxu0 0
        %1844 = vmatpush2.bf16.msra.mxu0 0
        %1845 = vmatprep.subr.bf16.mxu0 0
        %1846 = vmatpush2.bf16.msra.mxu0 0
        %1847 = vmatprep.subr.bf16.mxu0 0
        %1848 = vmatpush2.bf16.msra.mxu0 0
        %1849 = vmatprep.subr.bf16.mxu0 0
        %1850 = vmatpush2.bf16.msra.mxu0 0
        %1851 = vmatprep.subr.bf16.mxu0 0
        %1852 = vmatpush2.bf16.msra.mxu0 0
        %1853 = vmatprep.subr.bf16.mxu0 0
        %1854 = vmatpush2.bf16.msra.mxu0 0
        %1855 = vmatprep.subr.bf16.mxu0 0
        %1856 = vmatpush2.bf16.msra.mxu0 0
        %1857 = vmatprep.mubr.bf16.mxu0 0
        %1858 = vmatmul.mubr.bf16.gmra.mxu0 %v1753
        %v1859 = vpop.f32.mrf.mxu0
        %v1860 = vadd.f32 %v1775, %v1859
        %v1861 = vpop.f32.mrf.mxu0
        %v1862 = vpop.f32.mrf.mxu0
        %v1863 = vpop.f32.mrf.mxu0
        %1864 = vdwg.mxu0
        %v1865 = vld [vmem:[%s823] sm:$0xf]
        %v1866 = vunpack.c.l.bf16 %v1865
        %v1867 = vsub.f32 %v1860, %v1866
        %v1868 = vand.u32 2147483647, %v1867
        %v1869 = vmul.f32 %v1868, %v1504
        %v1870 = vsel %vm857, %v1869, 0.0
        %1871 = vadd.xlane.f32.xlu0 %v1870
        %v1872 = vpop.xlane.xlu0 %1871
        %v1873 = vrot.slane %v1872, 4
        %v1874 = vadd.f32 %v1872, %v1873
        %v1875 = vrot.slane %v1874, 2
        %v1876 = vadd.f32 %v1874, %v1875
        %v1877 = vrot.slane %v1876, 1
        %v1878 = vadd.f32 %v1876, %v1877
        %s1879 = vtos %v1878
        %vm1880 = vcmp.lt.s32.totalorder %v1498, 4
        %v1881 = vstv %s1533
        %v1882 = vstv %s1879
        %v1883 = vsel %vm1880, %v1881, %v1882
        %1884 = vst [vmem:[%s831] sm:$0xff] %v1883
        %s1885 = sand.u32 %s502, 1
        %s1886 = scalar_lea.sflag [#allocation4], %s1885
        %s1887 = sand.u32 %s502, 1
        %s1888 = smul.addr %s1887, 8
        %s1889 = scalar_lea.vmem [#allocation19], %s1888
        %p1890 = scmp.lt.s32.totalorder %s43, 1
        %s1891 = scalar_select %p1890, %s43, 1
        %s1892 = smul.addr %s1891, 8
        %s1893 = scalar_lea.vmem %s22, %s1892
        // Predicated region
        $region145: #{praxis_vae_forward.1} parent=103 // pred_check
          %p1894 = pneg %p512
        $region146: #{praxis_vae_forward.1} parent=103 // pred_check_branch
          %1896 = sbr.rel (%p1894) target = $region148
        $region147: #{praxis_vae_forward.1} parent=103 // pred_region
          %s1898 = ssub.s32 128, 128
          %1899 = vsyncadd %s1886, %s1898
          %s1900 = smul.addr %s43, 128
          %s1901 = scalar_lea.hbm %s21, %s1900
          %s1903 = sshll.u32 %s1889, 4
          %s1904 = int_to_ptr.vmem [resolvable:$true] %s1903
          %1906 = dma.vmem_to_hbm [thread:$0]  %s1904, 128, %s1901, %s1886
        $region148: #{praxis_vae_forward.1} parent=103 // pred_fallthru
          _
        // Predicated region
        $region149: #{praxis_vae_forward.1} parent=103 // pred_check
          %p1907 = pneg %p538
        $region150: #{praxis_vae_forward.1} parent=103 // pred_check_branch
          %1909 = sbr.rel (%p1907) target = $region152
        $region151: #{praxis_vae_forward.1} parent=103 // pred_region
          _
        $region152: #{praxis_vae_forward.1} parent=103 // pred_fallthru
          _
      $region104: #{praxis_vae_forward.1} parent=5 // pred_fallthru
        _
      %p1910 = scmp.le.s32.totalorder 2, %s38
      // Predicated region
      $region153: #{praxis_vae_forward.1} parent=5 // pred_check
        %p1911 = pneg %p1910
      $region154: #{praxis_vae_forward.1} parent=5 // pred_check_branch
        %1913 = sbr.rel (%p1911) target = $region156
      $region155: #{praxis_vae_forward.1} parent=5 // pred_region
        %s1914 = ssub.s32 %s38, 2
        // Predicated region
        $region157: #{praxis_vae_forward.1} parent=155 // pred_check
          %p1915 = pneg %p518
        $region158: #{praxis_vae_forward.1} parent=155 // pred_check_branch
          %1917 = sbr.rel (%p1915) target = $region160
        $region159: #{praxis_vae_forward.1} parent=155 // pred_region
          %s1918 = sand.u32 %s503, 1
          %s1919 = scalar_lea.sflag [#allocation4], %s1918
          %s1920 = sand.u32 %s503, 1
          %s1921 = smul.addr %s1920, 8
          %s1922 = scalar_lea.vmem [#allocation19], %s1921
          %1923 = dma.done %s1919, 128
        $region160: #{praxis_vae_forward.1} parent=155 // pred_fallthru
          _
        // Predicated region
        $region161: #{praxis_vae_forward.1} parent=155 // pred_check
          %p1924 = pneg %p544
        $region162: #{praxis_vae_forward.1} parent=155 // pred_check_branch
          %1926 = sbr.rel (%p1924) target = $region164
        $region163: #{praxis_vae_forward.1} parent=155 // pred_region
          %p1927 = scmp.lt.s32.totalorder %s44, 1
          %s1928 = scalar_select %p1927, %s44, 1
          %s1929 = smul.addr %s1928, 8
          %s1930 = scalar_lea.vmem %s22, %s1929
        $region164: #{praxis_vae_forward.1} parent=155 // pred_fallthru
          _
      $region156: #{praxis_vae_forward.1} parent=5 // pred_fallthru
        _
    $region6: #{praxis_vae_forward.1} parent=1 // loop_footer
      %s42 = sadd.s32 1, %s38
    $region7: #{praxis_vae_forward.1} parent=1 // loop_footer_branch
      %37 = sbr.rel target = $region3
    $region8: #{praxis_vae_forward.1} parent=1 // loop_exit
      _
    %1931 = vsyncpa [#allocation3], 1
    %s1932 = scalar_lea.sflag [#allocation3], 1
    %1933 = vsyncpa %s1932, 1
    %1934 = vsyncpa [#allocation7], 1
    %1935 = vsyncpa [#allocation10], 1
    %1936 = vsyncpa [#allocation13], 1
    %1937 = vsyncpa [#allocation16], 1
    %1938 = vsyncpa [#allocation4], 1
    %s1939 = scalar_lea.sflag [#allocation4], 1
    %1940 = vsyncpa %s1939, 1
    %1941 = vsyncpa [#allocation5], 1
    %s1942 = scalar_lea.sflag [#allocation5], 1
    %1943 = vsyncpa %s1942, 1

</llo_original>
